<compile_context>
chip_gen: v5e
topology: v5e:2x2
jax: 0.10.0
libtpu: 0.0.40
codegen_flags: <defaults>
</compile_context>

<pallas_src>
import functools

import jax
import jax.numpy as jnp
from jax.experimental import pallas as pl
from jax.experimental.pallas import tpu as pltpu

LN_EPS = 1e-5  # PyTorch nn.LayerNorm default


def _mlp_kernel(x_ref, w1_ref, p_ref, w2_ref, o_ref):
    # Packed per-feature params: row 0 = b1, 1 = gamma, 2 = beta, 3 = b2.
    p = p_ref[...]
    b1 = p[0:1, :]
    gamma = p[1:2, :]
    beta = p[2:3, :]
    b2 = p[3:4, :]

    # Layer 1: Linear(input_shape -> hidden_dims[0])  (MXU, f32 accumulation)
    h1 = jnp.dot(x_ref[...], w1_ref[...],
                 preferred_element_type=jnp.float32) + b1

    # LayerNorm(hidden_dims[0]) over the last dim.
    # Variance via E[h^2] - mu^2: the two lane-reductions are independent and
    # can overlap in the XLU.
    mu = jnp.mean(h1, axis=-1, keepdims=True)
    ms = jnp.mean(h1 * h1, axis=-1, keepdims=True)
    h1n = (h1 - mu) * jax.lax.rsqrt(ms - mu * mu + LN_EPS)
    h1n = h1n * gamma + beta

    # Activation (ReLU)
    a1 = jnp.maximum(h1n, 0.0)

    # Layer 2: Linear(hidden_dims[0] -> hidden_dims[1])  (MXU, f32 accumulation)
    h2 = jnp.dot(a1.astype(w2_ref.dtype), w2_ref[...],
                 preferred_element_type=jnp.float32) + b2

    # Final activation (ReLU)
    o_ref[...] = jnp.maximum(h2, 0.0).astype(o_ref.dtype)


@functools.partial(jax.jit, static_argnames=("block_b", "use_bf16"))
def mlp_forward(x, w1, b1, gamma, beta, w2, b2, *, block_b=512, use_bf16=False):
    B, D_in = x.shape
    H1 = w1.shape[1]
    H2 = w2.shape[1]
    assert H1 == H2, "param packing assumes hidden_dims[0] == hidden_dims[1]"

    if use_bf16:
        # Native MXU dtype on v6e/v7x + halved operand DMA; accumulation stays f32.
        x = x.astype(jnp.bfloat16)
        w1 = w1.astype(jnp.bfloat16)
        w2 = w2.astype(jnp.bfloat16)

    # Pad the batch to a multiple of block_b so any MXU-friendly tile works.
    # Padded rows compute finite garbage (bias-only) and are sliced off below.
    n_blocks = pl.cdiv(B, block_b)
    Bp = n_blocks * block_b
    if Bp != B:
        x = jnp.pad(x, ((0, Bp - B), (0, 0)))

    # Fuse the five tiny (1, H) operands into one (4, H) operand / one DMA.
    packed = jnp.concatenate([b1, gamma, beta, b2], axis=0).astype(jnp.float32)

    flops = 2 * Bp * (D_in * H1 + H1 * H2)
    bytes_accessed = (x.size * x.dtype.itemsize
                      + w1.size * w1.dtype.itemsize
                      + w2.size * w2.dtype.itemsize
                      + packed.size * 4
                      + Bp * H2 * 4)

    out = pl.pallas_call(
        _mlp_kernel,
        out_shape=jax.ShapeDtypeStruct((Bp, H2), jnp.float32),
        grid_spec=pltpu.PrefetchScalarGridSpec(
            num_scalar_prefetch=0,
            grid=(n_blocks,),
            in_specs=[
                pl.BlockSpec((block_b, D_in), lambda i: (i, 0)),  # x tile
                pl.BlockSpec((D_in, H1), lambda i: (0, 0)),       # W1 (resident)
                pl.BlockSpec((4, H1), lambda i: (0, 0)),          # b1/gamma/beta/b2
                pl.BlockSpec((H1, H2), lambda i: (0, 0)),         # W2 (resident)
            ],
            out_specs=pl.BlockSpec((block_b, H2), lambda i: (i, 0)),
        ),
        compiler_params=pltpu.CompilerParams(
            dimension_semantics=("parallel",),
        ),
        cost_estimate=pl.CostEstimate(
            flops=flops,
            transcendentals=Bp,           # one rsqrt per row
            bytes_accessed=bytes_accessed,
        ),
    )(x, w1, packed, w2)

    return out[:B] if Bp != B else out


def init_params(key, input_shape, hidden_dims):
    """Deterministic init mimicking nn.Linear (uniform +-1/sqrt(fan_in)) and
    nn.LayerNorm (gamma=1, beta=0). Weights stored as (in, out)."""
    k1, k2, k3, k4 = jax.random.split(key, 4)
    h1, h2 = hidden_dims

    lim1 = 1.0 / jnp.sqrt(input_shape)
    w1 = jax.random.uniform(k1, (input_shape, h1), jnp.float32, -lim1, lim1)
    b1 = jax.random.uniform(k2, (1, h1), jnp.float32, -lim1, lim1)

    gamma = jnp.ones((1, h1), jnp.float32)
    beta = jnp.zeros((1, h1), jnp.float32)

    lim2 = 1.0 / jnp.sqrt(h1)
    w2 = jax.random.uniform(k3, (h1, h2), jnp.float32, -lim2, lim2)
    b2 = jax.random.uniform(k4, (1, h2), jnp.float32, -lim2, lim2)

    return w1, b1, gamma, beta, w2, b2


def mlp_reference(x, w1, b1, gamma, beta, w2, b2):
    """Pure-JAX reference matching the PyTorch forward semantics."""
    h1 = x @ w1 + b1
    mu = jnp.mean(h1, axis=-1, keepdims=True)
    var = jnp.mean((h1 - mu) ** 2, axis=-1, keepdims=True)
    h1n = (h1 - mu) / jnp.sqrt(var + LN_EPS) * gamma + beta
    a1 = jnp.maximum(h1n, 0.0)
    h2 = a1 @ w2 + b2
    return jnp.maximum(h2, 0.0)


if __name__ == "__main__":
    key = jax.random.PRNGKey(0)
    k_x, k_p = jax.random.split(key)

    B, D_in = 1000, 32            # non-multiple batch exercises the cdiv/pad path
    hidden_dims = [128, 128]

    x = jax.random.normal(k_x, (B, D_in), jnp.float32)
    params = init_params(k_p, D_in, hidden_dims)
    ref = mlp_reference(x, *params)

    # f32 path (default): tight tolerance vs reference.
    out = jax.block_until_ready(mlp_forward(x, *params))
    assert out.shape == (B, hidden_dims[-1]), out.shape
    assert jnp.allclose(out, ref, atol=1e-4, rtol=1e-4), "f32 mismatch vs reference"

    # bf16-operand path (v6e/v7x native MXU dtype): looser tolerance.
    out_bf16 = jax.block_until_ready(mlp_forward(x, *params, use_bf16=True))
    assert out_bf16.shape == (B, hidden_dims[-1]), out_bf16.shape
    assert jnp.allclose(out_bf16, ref, atol=3e-2, rtol=3e-2), "bf16 mismatch vs reference"

    print("KERNEL_OK")
</pallas_src>

<mosaic_0001>
module attributes {stable_mosaic.version = 11 : i64} {
  func.func @_mlp_kernel(%arg0: i32, %arg1: memref<512x32xf32, #tpu.memory_space<vmem>>, %arg2: memref<32x128xf32, #tpu.memory_space<vmem>>, %arg3: memref<4x128xf32, #tpu.memory_space<vmem>>, %arg4: memref<128x128xf32, #tpu.memory_space<vmem>>, %arg5: memref<512x128xf32, #tpu.memory_space<vmem>>) attributes {dimension_semantics = [#tpu.dimension_semantics<parallel>], iteration_bounds = array<i64: 2>, scalar_prefetch = 0 : i64, scratch_operands = 0 : i64, tpu.core_type = #tpu.core_type<tc>, window_params = [{transform_indices = @transform_0, window_bounds = array<i64: 512, 32>}, {pipeline_mode = #tpu.pipeline_mode<synchronous>, transform_indices = @transform_1, window_bounds = array<i64: 32, 128>}, {pipeline_mode = #tpu.pipeline_mode<synchronous>, transform_indices = @transform_2, window_bounds = array<i64: 4, 128>}, {pipeline_mode = #tpu.pipeline_mode<synchronous>, transform_indices = @transform_3, window_bounds = array<i64: 128, 128>}, {transform_indices = @transform_4, window_bounds = array<i64: 512, 128>}]} {
    %c0 = arith.constant 0 : index
    %c0_0 = arith.constant 0 : index
    %0 = vector.load %arg3[%c0, %c0_0] : memref<4x128xf32, #tpu.memory_space<vmem>>, vector<4x128xf32>
    %1 = vector.extract_strided_slice %0 {offsets = [0, 0], sizes = [1, 128], strides = [1, 1]} : vector<4x128xf32> to vector<1x128xf32>
    %2 = vector.extract_strided_slice %0 {offsets = [1, 0], sizes = [1, 128], strides = [1, 1]} : vector<4x128xf32> to vector<1x128xf32>
    %3 = vector.extract_strided_slice %0 {offsets = [2, 0], sizes = [1, 128], strides = [1, 1]} : vector<4x128xf32> to vector<1x128xf32>
    %4 = vector.extract_strided_slice %0 {offsets = [3, 0], sizes = [1, 128], strides = [1, 1]} : vector<4x128xf32> to vector<1x128xf32>
    %c0_1 = arith.constant 0 : index
    %c0_2 = arith.constant 0 : index
    %5 = vector.load %arg1[%c0_1, %c0_2] : memref<512x32xf32, #tpu.memory_space<vmem>>, vector<512x32xf32>
    %c0_3 = arith.constant 0 : index
    %c0_4 = arith.constant 0 : index
    %6 = vector.load %arg2[%c0_3, %c0_4] : memref<32x128xf32, #tpu.memory_space<vmem>>, vector<32x128xf32>
    %cst = arith.constant dense<0.000000e+00> : vector<512x128xf32>
    %7 = tpu.matmul %5, %6, %cst {dimension_numbers = #tpu.dot_dimension_numbers<[1], [0], [0], [1], [0, 0, 1, 1], [], []>} : vector<512x32xf32>, vector<32x128xf32>, vector<512x128xf32> -> vector<512x128xf32>
    %8 = vector.broadcast %1 : vector<1x128xf32> to vector<512x128xf32>
    %9 = arith.addf %7, %8 : vector<512x128xf32>
    %cst_5 = arith.constant dense<0.000000e+00> : vector<512xf32>
    %10 = vector.multi_reduction <add>, %9, %cst_5 [1] : vector<512x128xf32> to vector<512xf32>
    %11 = vector.shape_cast %10 : vector<512xf32> to vector<512x1xf32>
    %cst_6 = arith.constant 1.280000e+02 : f32
    %12 = vector.broadcast %cst_6 : f32 to vector<512x1xf32>
    %13 = arith.divf %11, %12 : vector<512x1xf32>
    %14 = arith.mulf %9, %9 : vector<512x128xf32>
    %cst_7 = arith.constant dense<0.000000e+00> : vector<512xf32>
    %15 = vector.multi_reduction <add>, %14, %cst_7 [1] : vector<512x128xf32> to vector<512xf32>
    %16 = vector.shape_cast %15 : vector<512xf32> to vector<512x1xf32>
    %cst_8 = arith.constant 1.280000e+02 : f32
    %17 = vector.broadcast %cst_8 : f32 to vector<512x1xf32>
    %18 = arith.divf %16, %17 : vector<512x1xf32>
    %19 = vector.broadcast %13 : vector<512x1xf32> to vector<512x128xf32>
    %20 = arith.subf %9, %19 : vector<512x128xf32>
    %21 = arith.mulf %13, %13 : vector<512x1xf32>
    %22 = arith.subf %18, %21 : vector<512x1xf32>
    %cst_9 = arith.constant 9.99999974E-6 : f32
    %23 = vector.broadcast %cst_9 : f32 to vector<512x1xf32>
    %24 = arith.addf %22, %23 : vector<512x1xf32>
    %25 = math.rsqrt %24 : vector<512x1xf32>
    %26 = vector.broadcast %25 : vector<512x1xf32> to vector<512x128xf32>
    %27 = arith.mulf %20, %26 : vector<512x128xf32>
    %28 = vector.broadcast %2 : vector<1x128xf32> to vector<512x128xf32>
    %29 = arith.mulf %27, %28 : vector<512x128xf32>
    %30 = vector.broadcast %3 : vector<1x128xf32> to vector<512x128xf32>
    %31 = arith.addf %29, %30 : vector<512x128xf32>
    %cst_10 = arith.constant 0.000000e+00 : f32
    %32 = vector.broadcast %cst_10 : f32 to vector<512x128xf32>
    %33 = arith.maximumf %31, %32 : vector<512x128xf32>
    %c0_11 = arith.constant 0 : index
    %c0_12 = arith.constant 0 : index
    %34 = vector.load %arg4[%c0_11, %c0_12] : memref<128x128xf32, #tpu.memory_space<vmem>>, vector<128x128xf32>
    %cst_13 = arith.constant dense<0.000000e+00> : vector<512x128xf32>
    %35 = tpu.matmul %33, %34, %cst_13 {dimension_numbers = #tpu.dot_dimension_numbers<[1], [0], [0], [1], [0, 0, 1, 1], [], []>} : vector<512x128xf32>, vector<128x128xf32>, vector<512x128xf32> -> vector<512x128xf32>
    %36 = vector.broadcast %4 : vector<1x128xf32> to vector<512x128xf32>
    %37 = arith.addf %35, %36 : vector<512x128xf32>
    %cst_14 = arith.constant 0.000000e+00 : f32
    %38 = vector.broadcast %cst_14 : f32 to vector<512x128xf32>
    %39 = arith.maximumf %37, %38 : vector<512x128xf32>
    %c0_15 = arith.constant 0 : index
    %c0_16 = arith.constant 0 : index
    %40 = vector.load %arg5[%c0_15, %c0_16] : memref<512x128xf32, #tpu.memory_space<vmem>>, vector<512x128xf32>
    tpu.vector_store %arg5[%c0_15, %c0_16], %39 {strides = array<i32>} : memref<512x128xf32, #tpu.memory_space<vmem>>, vector<512x128xf32>,
    return
  }
  func.func @transform_0(%arg0: i32) -> (i32, i32) {
    %c0_i32 = arith.constant 0 : i32
    %c0_i32_0 = arith.constant 0 : i32
    return %arg0, %c0_i32 : i32, i32
  }
  func.func @transform_1(%arg0: i32) -> (i32, i32) {
    %c0_i32 = arith.constant 0 : i32
    %c0_i32_0 = arith.constant 0 : i32
    %c0_i32_1 = arith.constant 0 : i32
    return %c0_i32, %c0_i32_0 : i32, i32
  }
  func.func @transform_2(%arg0: i32) -> (i32, i32) {
    %c0_i32 = arith.constant 0 : i32
    %c0_i32_0 = arith.constant 0 : i32
    %c0_i32_1 = arith.constant 0 : i32
    return %c0_i32, %c0_i32_0 : i32, i32
  }
  func.func @transform_3(%arg0: i32) -> (i32, i32) {
    %c0_i32 = arith.constant 0 : i32
    %c0_i32_0 = arith.constant 0 : i32
    %c0_i32_1 = arith.constant 0 : i32
    return %c0_i32, %c0_i32_0 : i32, i32
  }
  func.func @transform_4(%arg0: i32) -> (i32, i32) {
    %c0_i32 = arith.constant 0 : i32
    %c0_i32_0 = arith.constant 0 : i32
    return %arg0, %c0_i32 : i32, i32
  }
}

</mosaic_0001>

<llo_original>
// kernel: mlp_forward.1
$region0: #{mlp_forward.1}
  #allocation0 [shape = 'u32[]', space=smem, size = 0x4, offset = 0x4, fixed_abs, tag = 'smem constant byte address 0x4 - core index']
  #allocation1 [shape = 'u32[72,128]{1,0:T(1,128)}', space=vmem, size = 0x9000, scoped, tag = 'internal scratch']
  %s0 = inlined_call_operand.vmem [shape: f32[1024,32], index: 0, kind: input, shape index: {}]
  %s1 = inlined_call_operand.vmem [shape: f32[32,128], index: 1, kind: input, shape index: {}]
  %s2 = inlined_call_operand.vmem [shape: f32[4,128], index: 2, kind: input, shape index: {}]
  %s3 = inlined_call_operand.vmem [shape: f32[128,128], index: 3, kind: input, shape index: {}]
  %s4 = inlined_call_operand.vmem [shape: f32[1024,128], index: 4, kind: output, shape index: {}]
  %s5 = sld [smem:[#allocation0]]
  $region49: #{mlp_forward.1} parent=0
    _
  %s7 = ssub.s32 1, %s5
  %s8 = scalar_select 0, %s7, %s5
  loop: start=0, step=1, limit=4
  $region2: #{mlp_forward.1} parent=0 // loop_pre_header
    _
  $region3: #{mlp_forward.1} parent=0 // loop_header
    %s10 = sphi 0, %s14
    %p11 = scmp.ge.s32.totalorder %s10, 4
    %s20 = sphi 0, %s22
    %s23 = sphi 0, %s20
    %s24 = sphi 0, %s23
    %s40 = sphi 0, %s24
    %s44 = sphi 0, %s44
    %s46 = sphi 0, %s44
    %s47 = sphi 0, %s46
    %s61 = sphi 0, %s47
    %s65 = sphi 0, %s65
    %s67 = sphi 0, %s65
    %s68 = sphi 0, %s67
    %s82 = sphi 0, %s68
    %s86 = sphi 0, %s86
    %s88 = sphi 0, %s86
    %s89 = sphi 0, %s88
    %s103 = sphi 0, %s89
    %s109 = sphi 0, %s111
    %s112 = sphi 0, %s109
    %s113 = sphi 0, %s112
    %s129 = sphi 0, %s113
  $region4: #{mlp_forward.1} parent=0 // loop_header_branch
    %13 = sbr.rel (%p11) target = $region8
  $region5: #{mlp_forward.1} parent=0 // loop_body
    %s15 = ssub.s32 %s10, 1
    %s16 = ssub.s32 %s10, 2
    %s17 = sadd.s32 %s10, 1
    %s18 = ssub.s32 %s10, %s17
    %p19 = scmp.eq.s32.totalorder %s18, 0
    %s21 = sadd.s32 %s20, 1
    %s22 = scalar_select %p19, %s20, %s21
    %p25 = pneg %p19
    %p26 = scmp.eq.s32.totalorder %s10, 1
    %p27 = por %p25, %p26
    %p28 = scmp.ne.s32.totalorder %s20, %s23
    %p29 = scmp.eq.s32.totalorder %s10, 0
    %p30 = por %p28, %p29
    %p31 = scmp.ne.s32.totalorder %s20, %s23
    %p32 = scmp.eq.s32.totalorder %s15, 1
    %p33 = por %p31, %p32
    %p34 = scmp.ne.s32.totalorder %s23, %s24
    %p35 = scmp.eq.s32.totalorder %s15, 0
    %p36 = por %p34, %p35
    %p37 = scmp.ne.s32.totalorder %s23, %s24
    %p38 = scmp.eq.s32.totalorder %s16, 1
    %p39 = por %p37, %p38
    %p41 = scmp.ne.s32.totalorder %s24, %s40
    %p42 = scmp.eq.s32.totalorder %s16, 0
    %p43 = por %p41, %p42
    %s45 = sadd.s32 %s44, 1
    %p48 = scmp.eq.s32.totalorder %s10, 1
    %p49 = scmp.ne.s32.totalorder %s44, %s46
    %p50 = scmp.eq.s32.totalorder %s10, 0
    %p51 = por %p49, %p50
    %p52 = scmp.ne.s32.totalorder %s44, %s46
    %p53 = scmp.eq.s32.totalorder %s15, 1
    %p54 = por %p52, %p53
    %p55 = scmp.ne.s32.totalorder %s46, %s47
    %p56 = scmp.eq.s32.totalorder %s15, 0
    %p57 = por %p55, %p56
    %p58 = scmp.ne.s32.totalorder %s46, %s47
    %p59 = scmp.eq.s32.totalorder %s16, 1
    %p60 = por %p58, %p59
    %p62 = scmp.ne.s32.totalorder %s47, %s61
    %p63 = scmp.eq.s32.totalorder %s16, 0
    %p64 = por %p62, %p63
    %s66 = sadd.s32 %s65, 1
    %p69 = scmp.eq.s32.totalorder %s10, 1
    %p70 = scmp.ne.s32.totalorder %s65, %s67
    %p71 = scmp.eq.s32.totalorder %s10, 0
    %p72 = por %p70, %p71
    %p73 = scmp.ne.s32.totalorder %s65, %s67
    %p74 = scmp.eq.s32.totalorder %s15, 1
    %p75 = por %p73, %p74
    %p76 = scmp.ne.s32.totalorder %s67, %s68
    %p77 = scmp.eq.s32.totalorder %s15, 0
    %p78 = por %p76, %p77
    %p79 = scmp.ne.s32.totalorder %s67, %s68
    %p80 = scmp.eq.s32.totalorder %s16, 1
    %p81 = por %p79, %p80
    %p83 = scmp.ne.s32.totalorder %s68, %s82
    %p84 = scmp.eq.s32.totalorder %s16, 0
    %p85 = por %p83, %p84
    %s87 = sadd.s32 %s86, 1
    %p90 = scmp.eq.s32.totalorder %s10, 1
    %p91 = scmp.ne.s32.totalorder %s86, %s88
    %p92 = scmp.eq.s32.totalorder %s10, 0
    %p93 = por %p91, %p92
    %p94 = scmp.ne.s32.totalorder %s86, %s88
    %p95 = scmp.eq.s32.totalorder %s15, 1
    %p96 = por %p94, %p95
    %p97 = scmp.ne.s32.totalorder %s88, %s89
    %p98 = scmp.eq.s32.totalorder %s15, 0
    %p99 = por %p97, %p98
    %p100 = scmp.ne.s32.totalorder %s88, %s89
    %p101 = scmp.eq.s32.totalorder %s16, 1
    %p102 = por %p100, %p101
    %p104 = scmp.ne.s32.totalorder %s89, %s103
    %p105 = scmp.eq.s32.totalorder %s16, 0
    %p106 = por %p104, %p105
    %s107 = ssub.s32 %s10, %s17
    %p108 = scmp.eq.s32.totalorder %s107, 0
    %s110 = sadd.s32 %s109, 1
    %s111 = scalar_select %p108, %s109, %s110
    %p114 = pneg %p108
    %p115 = scmp.eq.s32.totalorder %s10, 1
    %p116 = por %p114, %p115
    %p117 = scmp.ne.s32.totalorder %s109, %s112
    %p118 = scmp.eq.s32.totalorder %s10, 0
    %p119 = por %p117, %p118
    %p120 = scmp.ne.s32.totalorder %s109, %s112
    %p121 = scmp.eq.s32.totalorder %s15, 1
    %p122 = por %p120, %p121
    %p123 = scmp.ne.s32.totalorder %s112, %s113
    %p124 = scmp.eq.s32.totalorder %s15, 0
    %p125 = por %p123, %p124
    %p126 = scmp.ne.s32.totalorder %s112, %s113
    %p127 = scmp.eq.s32.totalorder %s16, 1
    %p128 = por %p126, %p127
    %p130 = scmp.ne.s32.totalorder %s113, %s129
    %p131 = scmp.eq.s32.totalorder %s16, 0
    %p132 = por %p130, %p131
    %p133 = scmp.le.s32.totalorder 1, %s10
    %p134 = scmp.lt.s32.totalorder %s10, 3
    %p135 = pnand %p133, %p134
    %p136 = pneg %p135
    // Predicated region
    $region9: #{mlp_forward.1} parent=5 // pred_check
      _
    $region10: #{mlp_forward.1} parent=5 // pred_check_branch
      %138 = sbr.rel (%p135) target = $region12
    $region11: #{mlp_forward.1} parent=5 // pred_region
      %s139 = ssub.s32 %s10, 1
      // Predicated region
      $region13: #{mlp_forward.1} parent=11 // pred_check
        %p140 = pneg %p57
      $region14: #{mlp_forward.1} parent=11 // pred_check_branch
        %142 = sbr.rel (%p140) target = $region16
      $region15: #{mlp_forward.1} parent=11 // pred_region
        _
      $region16: #{mlp_forward.1} parent=11 // pred_fallthru
        _
      // Predicated region
      $region17: #{mlp_forward.1} parent=11 // pred_check
        %p143 = pneg %p78
      $region18: #{mlp_forward.1} parent=11 // pred_check_branch
        %145 = sbr.rel (%p143) target = $region20
      $region19: #{mlp_forward.1} parent=11 // pred_region
        _
      $region20: #{mlp_forward.1} parent=11 // pred_fallthru
        _
      // Predicated region
      $region21: #{mlp_forward.1} parent=11 // pred_check
        %p146 = pneg %p99
      $region22: #{mlp_forward.1} parent=11 // pred_check_branch
        %148 = sbr.rel (%p146) target = $region24
      $region23: #{mlp_forward.1} parent=11 // pred_region
        _
      $region24: #{mlp_forward.1} parent=11 // pred_fallthru
        _
    $region12: #{mlp_forward.1} parent=5 // pred_fallthru
      _
    %p149 = scmp.lt.s32.totalorder %s10, 2
    // Predicated region
    $region25: #{mlp_forward.1} parent=5 // pred_check
      %p150 = pneg %p149
    $region26: #{mlp_forward.1} parent=5 // pred_check_branch
      %152 = sbr.rel (%p150) target = $region28
    $region27: #{mlp_forward.1} parent=5 // pred_region
      // Predicated region
      $region29: #{mlp_forward.1} parent=27 // pred_check
        %p153 = pneg %p30
      $region30: #{mlp_forward.1} parent=27 // pred_check_branch
        %155 = sbr.rel (%p153) target = $region32
      $region31: #{mlp_forward.1} parent=27 // pred_region
        %s156 = smul.u32 64, %s10
        %p157 = scmp.lt.s32.totalorder %s156, 127
        %s158 = scalar_select %p157, %s156, 127
        %s159 = smul.addr %s158, 8
        %s160 = scalar_lea.vmem %s0, %s159
        %s161 = smul.u32 64, %s10
      $region32: #{mlp_forward.1} parent=27 // pred_fallthru
        _
    $region28: #{mlp_forward.1} parent=5 // pred_fallthru
      _
    %p162 = scmp.le.s32.totalorder 1, %s10
    %p163 = scmp.lt.s32.totalorder %s10, 3
    %p164 = pnand %p162, %p163
    %p165 = pneg %p164
    // Predicated region
    $region33: #{mlp_forward.1} parent=5 // pred_check
      _
    $region34: #{mlp_forward.1} parent=5 // pred_check_branch
      %167 = sbr.rel (%p164) target = $region36
    $region35: #{mlp_forward.1} parent=5 // pred_region
      %s168 = ssub.s32 %s10, 1
      %s169 = smul.u32 64, %s15
      %p170 = scmp.lt.s32.totalorder %s169, 127
      %s171 = scalar_select %p170, %s169, 127
      %s172 = smul.addr %s171, 8
      %s173 = scalar_lea.vmem %s0, %s172
      %p174 = pneg %p36
      %p175 = pneg %p33
      %p176 = pneg %p57
      %p177 = pneg %p54
      %p178 = pneg %p78
      %p179 = pneg %p75
      %p180 = pneg %p99
      %p181 = pneg %p96
      %p182 = pneg %p125
      %p183 = pneg %p122
      %s184 = smul.u32 64, %s15
      %p185 = scmp.lt.s32.totalorder %s184, 127
      %s186 = scalar_select %p185, %s184, 127
      %s187 = smul.addr %s186, 8
      %s188 = scalar_lea.vmem %s4, %s187
      %s189 = smul.u32 64, %s15
      %p190 = scmp.lt.s32.totalorder %s189, 127
      %s191 = scalar_select %p190, %s189, 127
      %s192 = smul.addr %s191, 8
      %s193 = scalar_lea.vmem %s0, %s192
      %s194 = smul.u32 64, %s15
      %s195 = smul.u32 64, %s15
      %p196 = scmp.lt.s32.totalorder %s195, 127
      %s197 = scalar_select %p196, %s195, 127
      %s198 = smul.addr %s197, 8
      %s199 = scalar_lea.vmem %s4, %s198
      %s200 = smul.u32 64, %s15
      %v201 = vld [vmem:[%s2] sm:$0xf]
      %v202 = vld [vmem:[%s193] sm:$0xff]
      %v203 = vld [vmem:[%s193 + $0x8] sm:$0xff]
      %v204 = vld [vmem:[%s193 + $0x10] sm:$0xff]
      %v205 = vld [vmem:[%s193 + $0x18] sm:$0xff]
      %v206 = vld [vmem:[%s193 + $0x20] sm:$0xff]
      %v207 = vld [vmem:[%s193 + $0x28] sm:$0xff]
      %v208 = vld [vmem:[%s193 + $0x30] sm:$0xff]
      %v209 = vld [vmem:[%s193 + $0x38] sm:$0xff]
      %v210 = vld [vmem:[%s193 + $0x40] sm:$0xff]
      %v211 = vld [vmem:[%s193 + $0x48] sm:$0xff]
      %v212 = vld [vmem:[%s193 + $0x50] sm:$0xff]
      %v213 = vld [vmem:[%s193 + $0x58] sm:$0xff]
      %v214 = vld [vmem:[%s193 + $0x60] sm:$0xff]
      %v215 = vld [vmem:[%s193 + $0x68] sm:$0xff]
      %v216 = vld [vmem:[%s193 + $0x70] sm:$0xff]
      %v217 = vld [vmem:[%s193 + $0x78] sm:$0xff]
      %v218 = vld [vmem:[%s193 + $0x80] sm:$0xff]
      %v219 = vld [vmem:[%s193 + $0x88] sm:$0xff]
      %v220 = vld [vmem:[%s193 + $0x90] sm:$0xff]
      %v221 = vld [vmem:[%s193 + $0x98] sm:$0xff]
      %v222 = vld [vmem:[%s193 + $0xa0] sm:$0xff]
      %v223 = vld [vmem:[%s193 + $0xa8] sm:$0xff]
      %v224 = vld [vmem:[%s193 + $0xb0] sm:$0xff]
      %v225 = vld [vmem:[%s193 + $0xb8] sm:$0xff]
      %v226 = vld [vmem:[%s193 + $0xc0] sm:$0xff]
      %v227 = vld [vmem:[%s193 + $0xc8] sm:$0xff]
      %v228 = vld [vmem:[%s193 + $0xd0] sm:$0xff]
      %v229 = vld [vmem:[%s193 + $0xd8] sm:$0xff]
      %v230 = vld [vmem:[%s193 + $0xe0] sm:$0xff]
      %v231 = vld [vmem:[%s193 + $0xe8] sm:$0xff]
      %v232 = vld [vmem:[%s193 + $0xf0] sm:$0xff]
      %v233 = vld [vmem:[%s193 + $0xf8] sm:$0xff]
      %v234 = vld [vmem:[%s193 + $0x100] sm:$0xff]
      %v235 = vld [vmem:[%s193 + $0x108] sm:$0xff]
      %v236 = vld [vmem:[%s193 + $0x110] sm:$0xff]
      %v237 = vld [vmem:[%s193 + $0x118] sm:$0xff]
      %v238 = vld [vmem:[%s193 + $0x120] sm:$0xff]
      %v239 = vld [vmem:[%s193 + $0x128] sm:$0xff]
      %v240 = vld [vmem:[%s193 + $0x130] sm:$0xff]
      %v241 = vld [vmem:[%s193 + $0x138] sm:$0xff]
      %v242 = vld [vmem:[%s193 + $0x140] sm:$0xff]
      %v243 = vld [vmem:[%s193 + $0x148] sm:$0xff]
      %v244 = vld [vmem:[%s193 + $0x150] sm:$0xff]
      %v245 = vld [vmem:[%s193 + $0x158] sm:$0xff]
      %v246 = vld [vmem:[%s193 + $0x160] sm:$0xff]
      %v247 = vld [vmem:[%s193 + $0x168] sm:$0xff]
      %v248 = vld [vmem:[%s193 + $0x170] sm:$0xff]
      %v249 = vld [vmem:[%s193 + $0x178] sm:$0xff]
      %v250 = vld [vmem:[%s193 + $0x180] sm:$0xff]
      %v251 = vld [vmem:[%s193 + $0x188] sm:$0xff]
      %v252 = vld [vmem:[%s193 + $0x190] sm:$0xff]
      %v253 = vld [vmem:[%s193 + $0x198] sm:$0xff]
      %v254 = vld [vmem:[%s193 + $0x1a0] sm:$0xff]
      %v255 = vld [vmem:[%s193 + $0x1a8] sm:$0xff]
      %v256 = vld [vmem:[%s193 + $0x1b0] sm:$0xff]
      %v257 = vld [vmem:[%s193 + $0x1b8] sm:$0xff]
      %v258 = vld [vmem:[%s193 + $0x1c0] sm:$0xff]
      %v259 = vld [vmem:[%s193 + $0x1c8] sm:$0xff]
      %v260 = vld [vmem:[%s193 + $0x1d0] sm:$0xff]
      %v261 = vld [vmem:[%s193 + $0x1d8] sm:$0xff]
      %v262 = vld [vmem:[%s193 + $0x1e0] sm:$0xff]
      %v263 = vld [vmem:[%s193 + $0x1e8] sm:$0xff]
      %v264 = vld [vmem:[%s193 + $0x1f0] sm:$0xff]
      %v265 = vld [vmem:[%s193 + $0x1f8] sm:$0xff]
      %v266 = vld [vmem:[%s1] sm:$0xff]
      %v267 = vld [vmem:[%s1 + $0x8] sm:$0xff]
      %v268 = vld [vmem:[%s1 + $0x10] sm:$0xff]
      %v269 = vld [vmem:[%s1 + $0x18] sm:$0xff]
      %v270 = vperm.slane %v201, 0
      %vm271 = vcmask 261120
      %v273 = vsel %vm271, %v202, 0
      %v276 = vsel %vm271, %v203, 0
      %v279 = vsel %vm271, %v204, 0
      %v282 = vsel %vm271, %v205, 0
      %v285 = vsel %vm271, %v206, 0
      %v288 = vsel %vm271, %v207, 0
      %v291 = vsel %vm271, %v208, 0
      %v294 = vsel %vm271, %v209, 0
      %v297 = vsel %vm271, %v210, 0
      %v300 = vsel %vm271, %v211, 0
      %v303 = vsel %vm271, %v212, 0
      %v306 = vsel %vm271, %v213, 0
      %v309 = vsel %vm271, %v214, 0
      %v312 = vsel %vm271, %v215, 0
      %v315 = vsel %vm271, %v216, 0
      %v318 = vsel %vm271, %v217, 0
      %v321 = vsel %vm271, %v218, 0
      %v324 = vsel %vm271, %v219, 0
      %v327 = vsel %vm271, %v220, 0
      %v330 = vsel %vm271, %v221, 0
      %v333 = vsel %vm271, %v222, 0
      %v336 = vsel %vm271, %v223, 0
      %v339 = vsel %vm271, %v224, 0
      %v342 = vsel %vm271, %v225, 0
      %v345 = vsel %vm271, %v226, 0
      %v348 = vsel %vm271, %v227, 0
      %v351 = vsel %vm271, %v228, 0
      %v354 = vsel %vm271, %v229, 0
      %v357 = vsel %vm271, %v230, 0
      %v360 = vsel %vm271, %v231, 0
      %v363 = vsel %vm271, %v232, 0
      %v366 = vsel %vm271, %v233, 0
      %v369 = vsel %vm271, %v234, 0
      %v372 = vsel %vm271, %v235, 0
      %v375 = vsel %vm271, %v236, 0
      %v378 = vsel %vm271, %v237, 0
      %v381 = vsel %vm271, %v238, 0
      %v384 = vsel %vm271, %v239, 0
      %v387 = vsel %vm271, %v240, 0
      %v390 = vsel %vm271, %v241, 0
      %v393 = vsel %vm271, %v242, 0
      %v396 = vsel %vm271, %v243, 0
      %v399 = vsel %vm271, %v244, 0
      %v402 = vsel %vm271, %v245, 0
      %v405 = vsel %vm271, %v246, 0
      %v408 = vsel %vm271, %v247, 0
      %v411 = vsel %vm271, %v248, 0
      %v414 = vsel %vm271, %v249, 0
      %v417 = vsel %vm271, %v250, 0
      %v420 = vsel %vm271, %v251, 0
      %v423 = vsel %vm271, %v252, 0
      %v426 = vsel %vm271, %v253, 0
      %v429 = vsel %vm271, %v254, 0
      %v432 = vsel %vm271, %v255, 0
      %v435 = vsel %vm271, %v256, 0
      %v438 = vsel %vm271, %v257, 0
      %v441 = vsel %vm271, %v258, 0
      %v444 = vsel %vm271, %v259, 0
      %v447 = vsel %vm271, %v260, 0
      %v450 = vsel %vm271, %v261, 0
      %v453 = vsel %vm271, %v262, 0
      %v456 = vsel %vm271, %v263, 0
      %v459 = vsel %vm271, %v264, 0
      %v462 = vsel %vm271, %v265, 0
      %464 = vmatpush.msra.mxu0 0.0
      %465 = vmatpush.msra.mxu0 0.0
      %466 = vmatpush.msra.mxu0 0.0
      %467 = vmatpush.msra.mxu0 0.0
      %468 = vmatpush.msra.mxu0 0.0
      %469 = vmatpush.msra.mxu0 0.0
      %470 = vmatpush.msra.mxu0 0.0
      %471 = vmatpush.msra.mxu0 0.0
      %472 = vmatpush.msra.mxu0 0.0
      %473 = vmatpush.msra.mxu0 0.0
      %474 = vmatpush.msra.mxu0 0.0
      %475 = vmatpush.msra.mxu0 0.0
      %476 = vmatpush.msra.mxu0 %v269
      %477 = vmatpush.msra.mxu0 %v268
      %478 = vmatpush.msra.mxu0 %v267
      %479 = vmatpush.msra.mxu0 %v266
      %480 = vmatmul.f32.gmra.mxu0 %v273
      %v481 = vpop.f32.mrf.mxu0
      %v482 = vadd.f32 %v270, %v481
      %483 = vmatmul.f32.gmra.mxu0 %v276
      %v484 = vpop.f32.mrf.mxu0
      %v485 = vadd.f32 %v270, %v484
      %486 = vmatmul.f32.gmra.mxu0 %v279
      %v487 = vpop.f32.mrf.mxu0
      %v488 = vadd.f32 %v270, %v487
      %489 = vmatmul.f32.gmra.mxu0 %v282
      %v490 = vpop.f32.mrf.mxu0
      %v491 = vadd.f32 %v270, %v490
      %492 = vmatmul.f32.gmra.mxu0 %v285
      %v493 = vpop.f32.mrf.mxu0
      %v494 = vadd.f32 %v270, %v493
      %495 = vmatmul.f32.gmra.mxu0 %v288
      %v496 = vpop.f32.mrf.mxu0
      %v497 = vadd.f32 %v270, %v496
      %498 = vmatmul.f32.gmra.mxu0 %v291
      %v499 = vpop.f32.mrf.mxu0
      %v500 = vadd.f32 %v270, %v499
      %501 = vmatmul.f32.gmra.mxu0 %v294
      %v502 = vpop.f32.mrf.mxu0
      %v503 = vadd.f32 %v270, %v502
      %504 = vmatmul.f32.gmra.mxu0 %v297
      %v505 = vpop.f32.mrf.mxu0
      %v506 = vadd.f32 %v270, %v505
      %507 = vmatmul.f32.gmra.mxu0 %v300
      %v508 = vpop.f32.mrf.mxu0
      %v509 = vadd.f32 %v270, %v508
      %510 = vmatmul.f32.gmra.mxu0 %v303
      %v511 = vpop.f32.mrf.mxu0
      %v512 = vadd.f32 %v270, %v511
      %513 = vmatmul.f32.gmra.mxu0 %v306
      %v514 = vpop.f32.mrf.mxu0
      %v515 = vadd.f32 %v270, %v514
      %516 = vmatmul.f32.gmra.mxu0 %v309
      %v517 = vpop.f32.mrf.mxu0
      %v518 = vadd.f32 %v270, %v517
      %519 = vmatmul.f32.gmra.mxu0 %v312
      %v520 = vpop.f32.mrf.mxu0
      %v521 = vadd.f32 %v270, %v520
      %522 = vmatmul.f32.gmra.mxu0 %v315
      %v523 = vpop.f32.mrf.mxu0
      %v524 = vadd.f32 %v270, %v523
      %525 = vmatmul.f32.gmra.mxu0 %v318
      %v526 = vpop.f32.mrf.mxu0
      %v527 = vadd.f32 %v270, %v526
      %528 = vmatmul.f32.gmra.mxu0 %v321
      %v529 = vpop.f32.mrf.mxu0
      %v530 = vadd.f32 %v270, %v529
      %531 = vmatmul.f32.gmra.mxu0 %v324
      %v532 = vpop.f32.mrf.mxu0
      %v533 = vadd.f32 %v270, %v532
      %534 = vmatmul.f32.gmra.mxu0 %v327
      %v535 = vpop.f32.mrf.mxu0
      %v536 = vadd.f32 %v270, %v535
      %537 = vmatmul.f32.gmra.mxu0 %v330
      %v538 = vpop.f32.mrf.mxu0
      %v539 = vadd.f32 %v270, %v538
      %540 = vmatmul.f32.gmra.mxu0 %v333
      %v541 = vpop.f32.mrf.mxu0
      %v542 = vadd.f32 %v270, %v541
      %543 = vmatmul.f32.gmra.mxu0 %v336
      %v544 = vpop.f32.mrf.mxu0
      %v545 = vadd.f32 %v270, %v544
      %546 = vmatmul.f32.gmra.mxu0 %v339
      %v547 = vpop.f32.mrf.mxu0
      %v548 = vadd.f32 %v270, %v547
      %549 = vmatmul.f32.gmra.mxu0 %v342
      %v550 = vpop.f32.mrf.mxu0
      %v551 = vadd.f32 %v270, %v550
      %552 = vmatmul.f32.gmra.mxu0 %v345
      %v553 = vpop.f32.mrf.mxu0
      %v554 = vadd.f32 %v270, %v553
      %555 = vmatmul.f32.gmra.mxu0 %v348
      %v556 = vpop.f32.mrf.mxu0
      %v557 = vadd.f32 %v270, %v556
      %558 = vmatmul.f32.gmra.mxu0 %v351
      %v559 = vpop.f32.mrf.mxu0
      %v560 = vadd.f32 %v270, %v559
      %561 = vmatmul.f32.gmra.mxu0 %v354
      %v562 = vpop.f32.mrf.mxu0
      %v563 = vadd.f32 %v270, %v562
      %564 = vmatmul.f32.gmra.mxu0 %v357
      %v565 = vpop.f32.mrf.mxu0
      %v566 = vadd.f32 %v270, %v565
      %567 = vmatmul.f32.gmra.mxu0 %v360
      %v568 = vpop.f32.mrf.mxu0
      %v569 = vadd.f32 %v270, %v568
      %570 = vmatmul.f32.gmra.mxu0 %v363
      %v571 = vpop.f32.mrf.mxu0
      %v572 = vadd.f32 %v270, %v571
      %573 = vmatmul.f32.gmra.mxu0 %v366
      %v574 = vpop.f32.mrf.mxu0
      %v575 = vadd.f32 %v270, %v574
      %576 = vmatmul.f32.gmra.mxu0 %v369
      %v577 = vpop.f32.mrf.mxu0
      %v578 = vadd.f32 %v270, %v577
      %579 = vmatmul.f32.gmra.mxu0 %v372
      %v580 = vpop.f32.mrf.mxu0
      %v581 = vadd.f32 %v270, %v580
      %582 = vmatmul.f32.gmra.mxu0 %v375
      %v583 = vpop.f32.mrf.mxu0
      %v584 = vadd.f32 %v270, %v583
      %585 = vmatmul.f32.gmra.mxu0 %v378
      %v586 = vpop.f32.mrf.mxu0
      %v587 = vadd.f32 %v270, %v586
      %588 = vmatmul.f32.gmra.mxu0 %v381
      %v589 = vpop.f32.mrf.mxu0
      %v590 = vadd.f32 %v270, %v589
      %591 = vmatmul.f32.gmra.mxu0 %v384
      %v592 = vpop.f32.mrf.mxu0
      %v593 = vadd.f32 %v270, %v592
      %594 = vmatmul.f32.gmra.mxu0 %v387
      %v595 = vpop.f32.mrf.mxu0
      %v596 = vadd.f32 %v270, %v595
      %597 = vmatmul.f32.gmra.mxu0 %v390
      %v598 = vpop.f32.mrf.mxu0
      %v599 = vadd.f32 %v270, %v598
      %600 = vmatmul.f32.gmra.mxu0 %v393
      %v601 = vpop.f32.mrf.mxu0
      %v602 = vadd.f32 %v270, %v601
      %603 = vmatmul.f32.gmra.mxu0 %v396
      %v604 = vpop.f32.mrf.mxu0
      %v605 = vadd.f32 %v270, %v604
      %606 = vmatmul.f32.gmra.mxu0 %v399
      %v607 = vpop.f32.mrf.mxu0
      %v608 = vadd.f32 %v270, %v607
      %609 = vmatmul.f32.gmra.mxu0 %v402
      %v610 = vpop.f32.mrf.mxu0
      %v611 = vadd.f32 %v270, %v610
      %612 = vmatmul.f32.gmra.mxu0 %v405
      %v613 = vpop.f32.mrf.mxu0
      %v614 = vadd.f32 %v270, %v613
      %615 = vmatmul.f32.gmra.mxu0 %v408
      %v616 = vpop.f32.mrf.mxu0
      %v617 = vadd.f32 %v270, %v616
      %618 = vmatmul.f32.gmra.mxu0 %v411
      %v619 = vpop.f32.mrf.mxu0
      %v620 = vadd.f32 %v270, %v619
      %621 = vmatmul.f32.gmra.mxu0 %v414
      %v622 = vpop.f32.mrf.mxu0
      %v623 = vadd.f32 %v270, %v622
      %624 = vmatmul.f32.gmra.mxu0 %v417
      %v625 = vpop.f32.mrf.mxu0
      %v626 = vadd.f32 %v270, %v625
      %627 = vmatmul.f32.gmra.mxu0 %v420
      %v628 = vpop.f32.mrf.mxu0
      %v629 = vadd.f32 %v270, %v628
      %630 = vmatmul.f32.gmra.mxu0 %v423
      %v631 = vpop.f32.mrf.mxu0
      %v632 = vadd.f32 %v270, %v631
      %633 = vmatmul.f32.gmra.mxu0 %v426
      %v634 = vpop.f32.mrf.mxu0
      %v635 = vadd.f32 %v270, %v634
      %636 = vmatmul.f32.gmra.mxu0 %v429
      %v637 = vpop.f32.mrf.mxu0
      %v638 = vadd.f32 %v270, %v637
      %639 = vmatmul.f32.gmra.mxu0 %v432
      %v640 = vpop.f32.mrf.mxu0
      %v641 = vadd.f32 %v270, %v640
      %642 = vmatmul.f32.gmra.mxu0 %v435
      %v643 = vpop.f32.mrf.mxu0
      %v644 = vadd.f32 %v270, %v643
      %645 = vmatmul.f32.gmra.mxu0 %v438
      %v646 = vpop.f32.mrf.mxu0
      %v647 = vadd.f32 %v270, %v646
      %648 = vmatmul.f32.gmra.mxu0 %v441
      %v649 = vpop.f32.mrf.mxu0
      %v650 = vadd.f32 %v270, %v649
      %651 = vmatmul.f32.gmra.mxu0 %v444
      %v652 = vpop.f32.mrf.mxu0
      %v653 = vadd.f32 %v270, %v652
      %654 = vmatmul.f32.gmra.mxu0 %v447
      %v655 = vpop.f32.mrf.mxu0
      %v656 = vadd.f32 %v270, %v655
      %657 = vmatmul.f32.gmra.mxu0 %v450
      %v658 = vpop.f32.mrf.mxu0
      %v659 = vadd.f32 %v270, %v658
      %660 = vmatmul.f32.gmra.mxu0 %v453
      %v661 = vpop.f32.mrf.mxu0
      %v662 = vadd.f32 %v270, %v661
      %663 = vmatmul.f32.gmra.mxu0 %v456
      %v664 = vpop.f32.mrf.mxu0
      %v665 = vadd.f32 %v270, %v664
      %666 = vmatmul.f32.gmra.mxu0 %v459
      %v667 = vpop.f32.mrf.mxu0
      %v668 = vadd.f32 %v270, %v667
      %669 = vmatmul.f32.gmra.mxu0 %v462
      %v670 = vpop.f32.mrf.mxu0
      %v671 = vadd.f32 %v270, %v670
      %672 = vdwg.mxu0
      %673 = vadd.xlane.f32.xlu0 %v482
      %v674 = vpop.xlane.xlu0 %673
      %675 = vadd.xlane.f32.xlu0 %v485
      %v676 = vpop.xlane.xlu0 %675
      %677 = vadd.xlane.f32.xlu0 %v488
      %v678 = vpop.xlane.xlu0 %677
      %679 = vadd.xlane.f32.xlu0 %v491
      %v680 = vpop.xlane.xlu0 %679
      %681 = vadd.xlane.f32.xlu0 %v494
      %v682 = vpop.xlane.xlu0 %681
      %683 = vadd.xlane.f32.xlu0 %v497
      %v684 = vpop.xlane.xlu0 %683
      %685 = vadd.xlane.f32.xlu0 %v500
      %v686 = vpop.xlane.xlu0 %685
      %687 = vadd.xlane.f32.xlu0 %v503
      %v688 = vpop.xlane.xlu0 %687
      %689 = vadd.xlane.f32.xlu0 %v506
      %v690 = vpop.xlane.xlu0 %689
      %691 = vadd.xlane.f32.xlu0 %v509
      %v692 = vpop.xlane.xlu0 %691
      %693 = vadd.xlane.f32.xlu0 %v512
      %v694 = vpop.xlane.xlu0 %693
      %695 = vadd.xlane.f32.xlu0 %v515
      %v696 = vpop.xlane.xlu0 %695
      %697 = vadd.xlane.f32.xlu0 %v518
      %v698 = vpop.xlane.xlu0 %697
      %699 = vadd.xlane.f32.xlu0 %v521
      %v700 = vpop.xlane.xlu0 %699
      %701 = vadd.xlane.f32.xlu0 %v524
      %v702 = vpop.xlane.xlu0 %701
      %703 = vadd.xlane.f32.xlu0 %v527
      %v704 = vpop.xlane.xlu0 %703
      %705 = vadd.xlane.f32.xlu0 %v530
      %v706 = vpop.xlane.xlu0 %705
      %707 = vadd.xlane.f32.xlu0 %v533
      %v708 = vpop.xlane.xlu0 %707
      %709 = vadd.xlane.f32.xlu0 %v536
      %v710 = vpop.xlane.xlu0 %709
      %711 = vadd.xlane.f32.xlu0 %v539
      %v712 = vpop.xlane.xlu0 %711
      %713 = vadd.xlane.f32.xlu0 %v542
      %v714 = vpop.xlane.xlu0 %713
      %715 = vadd.xlane.f32.xlu0 %v545
      %v716 = vpop.xlane.xlu0 %715
      %717 = vadd.xlane.f32.xlu0 %v548
      %v718 = vpop.xlane.xlu0 %717
      %719 = vadd.xlane.f32.xlu0 %v551
      %v720 = vpop.xlane.xlu0 %719
      %721 = vadd.xlane.f32.xlu0 %v554
      %v722 = vpop.xlane.xlu0 %721
      %723 = vadd.xlane.f32.xlu0 %v557
      %v724 = vpop.xlane.xlu0 %723
      %725 = vadd.xlane.f32.xlu0 %v560
      %v726 = vpop.xlane.xlu0 %725
      %727 = vadd.xlane.f32.xlu0 %v563
      %v728 = vpop.xlane.xlu0 %727
      %729 = vadd.xlane.f32.xlu0 %v566
      %v730 = vpop.xlane.xlu0 %729
      %731 = vadd.xlane.f32.xlu0 %v569
      %v732 = vpop.xlane.xlu0 %731
      %733 = vadd.xlane.f32.xlu0 %v572
      %v734 = vpop.xlane.xlu0 %733
      %735 = vadd.xlane.f32.xlu0 %v575
      %v736 = vpop.xlane.xlu0 %735
      %737 = vadd.xlane.f32.xlu0 %v578
      %v738 = vpop.xlane.xlu0 %737
      %739 = vadd.xlane.f32.xlu0 %v581
      %v740 = vpop.xlane.xlu0 %739
      %741 = vadd.xlane.f32.xlu0 %v584
      %v742 = vpop.xlane.xlu0 %741
      %743 = vadd.xlane.f32.xlu0 %v587
      %v744 = vpop.xlane.xlu0 %743
      %745 = vadd.xlane.f32.xlu0 %v590
      %v746 = vpop.xlane.xlu0 %745
      %747 = vadd.xlane.f32.xlu0 %v593
      %v748 = vpop.xlane.xlu0 %747
      %749 = vadd.xlane.f32.xlu0 %v596
      %v750 = vpop.xlane.xlu0 %749
      %751 = vadd.xlane.f32.xlu0 %v599
      %v752 = vpop.xlane.xlu0 %751
      %753 = vadd.xlane.f32.xlu0 %v602
      %v754 = vpop.xlane.xlu0 %753
      %755 = vadd.xlane.f32.xlu0 %v605
      %v756 = vpop.xlane.xlu0 %755
      %757 = vadd.xlane.f32.xlu0 %v608
      %v758 = vpop.xlane.xlu0 %757
      %759 = vadd.xlane.f32.xlu0 %v611
      %v760 = vpop.xlane.xlu0 %759
      %761 = vadd.xlane.f32.xlu0 %v614
      %v762 = vpop.xlane.xlu0 %761
      %763 = vadd.xlane.f32.xlu0 %v617
      %v764 = vpop.xlane.xlu0 %763
      %765 = vadd.xlane.f32.xlu0 %v620
      %v766 = vpop.xlane.xlu0 %765
      %767 = vadd.xlane.f32.xlu0 %v623
      %v768 = vpop.xlane.xlu0 %767
      %769 = vadd.xlane.f32.xlu0 %v626
      %v770 = vpop.xlane.xlu0 %769
      %771 = vadd.xlane.f32.xlu0 %v629
      %v772 = vpop.xlane.xlu0 %771
      %773 = vadd.xlane.f32.xlu0 %v632
      %v774 = vpop.xlane.xlu0 %773
      %775 = vadd.xlane.f32.xlu0 %v635
      %v776 = vpop.xlane.xlu0 %775
      %777 = vadd.xlane.f32.xlu0 %v638
      %v778 = vpop.xlane.xlu0 %777
      %779 = vadd.xlane.f32.xlu0 %v641
      %v780 = vpop.xlane.xlu0 %779
      %781 = vadd.xlane.f32.xlu0 %v644
      %v782 = vpop.xlane.xlu0 %781
      %783 = vadd.xlane.f32.xlu0 %v647
      %v784 = vpop.xlane.xlu0 %783
      %785 = vadd.xlane.f32.xlu0 %v650
      %v786 = vpop.xlane.xlu0 %785
      %787 = vadd.xlane.f32.xlu0 %v653
      %v788 = vpop.xlane.xlu0 %787
      %789 = vadd.xlane.f32.xlu0 %v656
      %v790 = vpop.xlane.xlu0 %789
      %791 = vadd.xlane.f32.xlu0 %v659
      %v792 = vpop.xlane.xlu0 %791
      %793 = vadd.xlane.f32.xlu0 %v662
      %v794 = vpop.xlane.xlu0 %793
      %795 = vadd.xlane.f32.xlu0 %v665
      %v796 = vpop.xlane.xlu0 %795
      %797 = vadd.xlane.f32.xlu0 %v668
      %v798 = vpop.xlane.xlu0 %797
      %799 = vadd.xlane.f32.xlu0 %v671
      %v800 = vpop.xlane.xlu0 %799
      %v801 = vrcp.pop 128.0
      %v802 = vmul.f32 128.0, %v801
      %v803 = vsub.f32 1.0, %v802
      %v804 = vmul.f32 %v801, %v803
      %v805 = vadd.f32 %v801, %v804
      %vm806 = vweird.f32 %v801
      %v807 = vsel %vm806, %v801, %v805
      %v808 = vmul.f32 %v674, %v807
      %v809 = vmul.f32 %v676, %v807
      %v810 = vmul.f32 %v678, %v807
      %v811 = vmul.f32 %v680, %v807
      %v812 = vmul.f32 %v682, %v807
      %v813 = vmul.f32 %v684, %v807
      %v814 = vmul.f32 %v686, %v807
      %v815 = vmul.f32 %v688, %v807
      %v816 = vmul.f32 %v690, %v807
      %v817 = vmul.f32 %v692, %v807
      %v818 = vmul.f32 %v694, %v807
      %v819 = vmul.f32 %v696, %v807
      %v820 = vmul.f32 %v698, %v807
      %v821 = vmul.f32 %v700, %v807
      %v822 = vmul.f32 %v702, %v807
      %v823 = vmul.f32 %v704, %v807
      %v824 = vmul.f32 %v706, %v807
      %v825 = vmul.f32 %v708, %v807
      %v826 = vmul.f32 %v710, %v807
      %v827 = vmul.f32 %v712, %v807
      %v828 = vmul.f32 %v714, %v807
      %v829 = vmul.f32 %v716, %v807
      %v830 = vmul.f32 %v718, %v807
      %v831 = vmul.f32 %v720, %v807
      %v832 = vmul.f32 %v722, %v807
      %v833 = vmul.f32 %v724, %v807
      %v834 = vmul.f32 %v726, %v807
      %v835 = vmul.f32 %v728, %v807
      %v836 = vmul.f32 %v730, %v807
      %v837 = vmul.f32 %v732, %v807
      %v838 = vmul.f32 %v734, %v807
      %v839 = vmul.f32 %v736, %v807
      %v840 = vmul.f32 %v738, %v807
      %v841 = vmul.f32 %v740, %v807
      %v842 = vmul.f32 %v742, %v807
      %v843 = vmul.f32 %v744, %v807
      %v844 = vmul.f32 %v746, %v807
      %v845 = vmul.f32 %v748, %v807
      %v846 = vmul.f32 %v750, %v807
      %v847 = vmul.f32 %v752, %v807
      %v848 = vmul.f32 %v754, %v807
      %v849 = vmul.f32 %v756, %v807
      %v850 = vmul.f32 %v758, %v807
      %v851 = vmul.f32 %v760, %v807
      %v852 = vmul.f32 %v762, %v807
      %v853 = vmul.f32 %v764, %v807
      %v854 = vmul.f32 %v766, %v807
      %v855 = vmul.f32 %v768, %v807
      %v856 = vmul.f32 %v770, %v807
      %v857 = vmul.f32 %v772, %v807
      %v858 = vmul.f32 %v774, %v807
      %v859 = vmul.f32 %v776, %v807
      %v860 = vmul.f32 %v778, %v807
      %v861 = vmul.f32 %v780, %v807
      %v862 = vmul.f32 %v782, %v807
      %v863 = vmul.f32 %v784, %v807
      %v864 = vmul.f32 %v786, %v807
      %v865 = vmul.f32 %v788, %v807
      %v866 = vmul.f32 %v790, %v807
      %v867 = vmul.f32 %v792, %v807
      %v868 = vmul.f32 %v794, %v807
      %v869 = vmul.f32 %v796, %v807
      %v870 = vmul.f32 %v798, %v807
      %v871 = vmul.f32 %v800, %v807
      %v872 = vmul.f32 %v482, %v482
      %v873 = vmul.f32 %v485, %v485
      %v874 = vmul.f32 %v488, %v488
      %v875 = vmul.f32 %v491, %v491
      %v876 = vmul.f32 %v494, %v494
      %v877 = vmul.f32 %v497, %v497
      %v878 = vmul.f32 %v500, %v500
      %v879 = vmul.f32 %v503, %v503
      %v880 = vmul.f32 %v506, %v506
      %v881 = vmul.f32 %v509, %v509
      %v882 = vmul.f32 %v512, %v512
      %v883 = vmul.f32 %v515, %v515
      %v884 = vmul.f32 %v518, %v518
      %v885 = vmul.f32 %v521, %v521
      %v886 = vmul.f32 %v524, %v524
      %v887 = vmul.f32 %v527, %v527
      %v888 = vmul.f32 %v530, %v530
      %v889 = vmul.f32 %v533, %v533
      %v890 = vmul.f32 %v536, %v536
      %v891 = vmul.f32 %v539, %v539
      %v892 = vmul.f32 %v542, %v542
      %v893 = vmul.f32 %v545, %v545
      %v894 = vmul.f32 %v548, %v548
      %v895 = vmul.f32 %v551, %v551
      %v896 = vmul.f32 %v554, %v554
      %v897 = vmul.f32 %v557, %v557
      %v898 = vmul.f32 %v560, %v560
      %v899 = vmul.f32 %v563, %v563
      %v900 = vmul.f32 %v566, %v566
      %v901 = vmul.f32 %v569, %v569
      %v902 = vmul.f32 %v572, %v572
      %v903 = vmul.f32 %v575, %v575
      %v904 = vmul.f32 %v578, %v578
      %v905 = vmul.f32 %v581, %v581
      %v906 = vmul.f32 %v584, %v584
      %v907 = vmul.f32 %v587, %v587
      %v908 = vmul.f32 %v590, %v590
      %v909 = vmul.f32 %v593, %v593
      %v910 = vmul.f32 %v596, %v596
      %v911 = vmul.f32 %v599, %v599
      %v912 = vmul.f32 %v602, %v602
      %v913 = vmul.f32 %v605, %v605
      %v914 = vmul.f32 %v608, %v608
      %v915 = vmul.f32 %v611, %v611
      %v916 = vmul.f32 %v614, %v614
      %v917 = vmul.f32 %v617, %v617
      %v918 = vmul.f32 %v620, %v620
      %v919 = vmul.f32 %v623, %v623
      %v920 = vmul.f32 %v626, %v626
      %v921 = vmul.f32 %v629, %v629
      %v922 = vmul.f32 %v632, %v632
      %v923 = vmul.f32 %v635, %v635
      %v924 = vmul.f32 %v638, %v638
      %v925 = vmul.f32 %v641, %v641
      %v926 = vmul.f32 %v644, %v644
      %v927 = vmul.f32 %v647, %v647
      %v928 = vmul.f32 %v650, %v650
      %v929 = vmul.f32 %v653, %v653
      %v930 = vmul.f32 %v656, %v656
      %v931 = vmul.f32 %v659, %v659
      %v932 = vmul.f32 %v662, %v662
      %v933 = vmul.f32 %v665, %v665
      %v934 = vmul.f32 %v668, %v668
      %v935 = vmul.f32 %v671, %v671
      %936 = vadd.xlane.f32.xlu0 %v872
      %v937 = vpop.xlane.xlu0 %936
      %938 = vadd.xlane.f32.xlu0 %v873
      %v939 = vpop.xlane.xlu0 %938
      %940 = vadd.xlane.f32.xlu0 %v874
      %v941 = vpop.xlane.xlu0 %940
      %942 = vadd.xlane.f32.xlu0 %v875
      %v943 = vpop.xlane.xlu0 %942
      %944 = vadd.xlane.f32.xlu0 %v876
      %v945 = vpop.xlane.xlu0 %944
      %946 = vadd.xlane.f32.xlu0 %v877
      %v947 = vpop.xlane.xlu0 %946
      %948 = vadd.xlane.f32.xlu0 %v878
      %v949 = vpop.xlane.xlu0 %948
      %950 = vadd.xlane.f32.xlu0 %v879
      %v951 = vpop.xlane.xlu0 %950
      %952 = vadd.xlane.f32.xlu0 %v880
      %v953 = vpop.xlane.xlu0 %952
      %954 = vadd.xlane.f32.xlu0 %v881
      %v955 = vpop.xlane.xlu0 %954
      %956 = vadd.xlane.f32.xlu0 %v882
      %v957 = vpop.xlane.xlu0 %956
      %958 = vadd.xlane.f32.xlu0 %v883
      %v959 = vpop.xlane.xlu0 %958
      %960 = vadd.xlane.f32.xlu0 %v884
      %v961 = vpop.xlane.xlu0 %960
      %962 = vadd.xlane.f32.xlu0 %v885
      %v963 = vpop.xlane.xlu0 %962
      %964 = vadd.xlane.f32.xlu0 %v886
      %v965 = vpop.xlane.xlu0 %964
      %966 = vadd.xlane.f32.xlu0 %v887
      %v967 = vpop.xlane.xlu0 %966
      %968 = vadd.xlane.f32.xlu0 %v888
      %v969 = vpop.xlane.xlu0 %968
      %970 = vadd.xlane.f32.xlu0 %v889
      %v971 = vpop.xlane.xlu0 %970
      %972 = vadd.xlane.f32.xlu0 %v890
      %v973 = vpop.xlane.xlu0 %972
      %974 = vadd.xlane.f32.xlu0 %v891
      %v975 = vpop.xlane.xlu0 %974
      %976 = vadd.xlane.f32.xlu0 %v892
      %v977 = vpop.xlane.xlu0 %976
      %978 = vadd.xlane.f32.xlu0 %v893
      %v979 = vpop.xlane.xlu0 %978
      %980 = vadd.xlane.f32.xlu0 %v894
      %v981 = vpop.xlane.xlu0 %980
      %982 = vadd.xlane.f32.xlu0 %v895
      %v983 = vpop.xlane.xlu0 %982
      %984 = vadd.xlane.f32.xlu0 %v896
      %v985 = vpop.xlane.xlu0 %984
      %986 = vadd.xlane.f32.xlu0 %v897
      %v987 = vpop.xlane.xlu0 %986
      %988 = vadd.xlane.f32.xlu0 %v898
      %v989 = vpop.xlane.xlu0 %988
      %990 = vadd.xlane.f32.xlu0 %v899
      %v991 = vpop.xlane.xlu0 %990
      %992 = vadd.xlane.f32.xlu0 %v900
      %v993 = vpop.xlane.xlu0 %992
      %994 = vadd.xlane.f32.xlu0 %v901
      %v995 = vpop.xlane.xlu0 %994
      %996 = vadd.xlane.f32.xlu0 %v902
      %v997 = vpop.xlane.xlu0 %996
      %998 = vadd.xlane.f32.xlu0 %v903
      %v999 = vpop.xlane.xlu0 %998
      %1000 = vadd.xlane.f32.xlu0 %v904
      %v1001 = vpop.xlane.xlu0 %1000
      %1002 = vadd.xlane.f32.xlu0 %v905
      %v1003 = vpop.xlane.xlu0 %1002
      %1004 = vadd.xlane.f32.xlu0 %v906
      %v1005 = vpop.xlane.xlu0 %1004
      %1006 = vadd.xlane.f32.xlu0 %v907
      %v1007 = vpop.xlane.xlu0 %1006
      %1008 = vadd.xlane.f32.xlu0 %v908
      %v1009 = vpop.xlane.xlu0 %1008
      %1010 = vadd.xlane.f32.xlu0 %v909
      %v1011 = vpop.xlane.xlu0 %1010
      %1012 = vadd.xlane.f32.xlu0 %v910
      %v1013 = vpop.xlane.xlu0 %1012
      %1014 = vadd.xlane.f32.xlu0 %v911
      %v1015 = vpop.xlane.xlu0 %1014
      %1016 = vadd.xlane.f32.xlu0 %v912
      %v1017 = vpop.xlane.xlu0 %1016
      %1018 = vadd.xlane.f32.xlu0 %v913
      %v1019 = vpop.xlane.xlu0 %1018
      %1020 = vadd.xlane.f32.xlu0 %v914
      %v1021 = vpop.xlane.xlu0 %1020
      %1022 = vadd.xlane.f32.xlu0 %v915
      %v1023 = vpop.xlane.xlu0 %1022
      %1024 = vadd.xlane.f32.xlu0 %v916
      %v1025 = vpop.xlane.xlu0 %1024
      %1026 = vadd.xlane.f32.xlu0 %v917
      %v1027 = vpop.xlane.xlu0 %1026
      %1028 = vadd.xlane.f32.xlu0 %v918
      %v1029 = vpop.xlane.xlu0 %1028
      %1030 = vadd.xlane.f32.xlu0 %v919
      %v1031 = vpop.xlane.xlu0 %1030
      %1032 = vadd.xlane.f32.xlu0 %v920
      %v1033 = vpop.xlane.xlu0 %1032
      %1034 = vadd.xlane.f32.xlu0 %v921
      %v1035 = vpop.xlane.xlu0 %1034
      %1036 = vadd.xlane.f32.xlu0 %v922
      %v1037 = vpop.xlane.xlu0 %1036
      %1038 = vadd.xlane.f32.xlu0 %v923
      %v1039 = vpop.xlane.xlu0 %1038
      %1040 = vadd.xlane.f32.xlu0 %v924
      %v1041 = vpop.xlane.xlu0 %1040
      %1042 = vadd.xlane.f32.xlu0 %v925
      %v1043 = vpop.xlane.xlu0 %1042
      %1044 = vadd.xlane.f32.xlu0 %v926
      %v1045 = vpop.xlane.xlu0 %1044
      %1046 = vadd.xlane.f32.xlu0 %v927
      %v1047 = vpop.xlane.xlu0 %1046
      %1048 = vadd.xlane.f32.xlu0 %v928
      %v1049 = vpop.xlane.xlu0 %1048
      %1050 = vadd.xlane.f32.xlu0 %v929
      %v1051 = vpop.xlane.xlu0 %1050
      %1052 = vadd.xlane.f32.xlu0 %v930
      %v1053 = vpop.xlane.xlu0 %1052
      %1054 = vadd.xlane.f32.xlu0 %v931
      %v1055 = vpop.xlane.xlu0 %1054
      %1056 = vadd.xlane.f32.xlu0 %v932
      %v1057 = vpop.xlane.xlu0 %1056
      %1058 = vadd.xlane.f32.xlu0 %v933
      %v1059 = vpop.xlane.xlu0 %1058
      %1060 = vadd.xlane.f32.xlu0 %v934
      %v1061 = vpop.xlane.xlu0 %1060
      %1062 = vadd.xlane.f32.xlu0 %v935
      %v1063 = vpop.xlane.xlu0 %1062
      %v1064 = vmul.f32 %v937, %v807
      %v1065 = vmul.f32 %v939, %v807
      %v1066 = vmul.f32 %v941, %v807
      %v1067 = vmul.f32 %v943, %v807
      %v1068 = vmul.f32 %v945, %v807
      %v1069 = vmul.f32 %v947, %v807
      %v1070 = vmul.f32 %v949, %v807
      %v1071 = vmul.f32 %v951, %v807
      %v1072 = vmul.f32 %v953, %v807
      %v1073 = vmul.f32 %v955, %v807
      %v1074 = vmul.f32 %v957, %v807
      %v1075 = vmul.f32 %v959, %v807
      %v1076 = vmul.f32 %v961, %v807
      %v1077 = vmul.f32 %v963, %v807
      %v1078 = vmul.f32 %v965, %v807
      %v1079 = vmul.f32 %v967, %v807
      %v1080 = vmul.f32 %v969, %v807
      %v1081 = vmul.f32 %v971, %v807
      %v1082 = vmul.f32 %v973, %v807
      %v1083 = vmul.f32 %v975, %v807
      %v1084 = vmul.f32 %v977, %v807
      %v1085 = vmul.f32 %v979, %v807
      %v1086 = vmul.f32 %v981, %v807
      %v1087 = vmul.f32 %v983, %v807
      %v1088 = vmul.f32 %v985, %v807
      %v1089 = vmul.f32 %v987, %v807
      %v1090 = vmul.f32 %v989, %v807
      %v1091 = vmul.f32 %v991, %v807
      %v1092 = vmul.f32 %v993, %v807
      %v1093 = vmul.f32 %v995, %v807
      %v1094 = vmul.f32 %v997, %v807
      %v1095 = vmul.f32 %v999, %v807
      %v1096 = vmul.f32 %v1001, %v807
      %v1097 = vmul.f32 %v1003, %v807
      %v1098 = vmul.f32 %v1005, %v807
      %v1099 = vmul.f32 %v1007, %v807
      %v1100 = vmul.f32 %v1009, %v807
      %v1101 = vmul.f32 %v1011, %v807
      %v1102 = vmul.f32 %v1013, %v807
      %v1103 = vmul.f32 %v1015, %v807
      %v1104 = vmul.f32 %v1017, %v807
      %v1105 = vmul.f32 %v1019, %v807
      %v1106 = vmul.f32 %v1021, %v807
      %v1107 = vmul.f32 %v1023, %v807
      %v1108 = vmul.f32 %v1025, %v807
      %v1109 = vmul.f32 %v1027, %v807
      %v1110 = vmul.f32 %v1029, %v807
      %v1111 = vmul.f32 %v1031, %v807
      %v1112 = vmul.f32 %v1033, %v807
      %v1113 = vmul.f32 %v1035, %v807
      %v1114 = vmul.f32 %v1037, %v807
      %v1115 = vmul.f32 %v1039, %v807
      %v1116 = vmul.f32 %v1041, %v807
      %v1117 = vmul.f32 %v1043, %v807
      %v1118 = vmul.f32 %v1045, %v807
      %v1119 = vmul.f32 %v1047, %v807
      %v1120 = vmul.f32 %v1049, %v807
      %v1121 = vmul.f32 %v1051, %v807
      %v1122 = vmul.f32 %v1053, %v807
      %v1123 = vmul.f32 %v1055, %v807
      %v1124 = vmul.f32 %v1057, %v807
      %v1125 = vmul.f32 %v1059, %v807
      %v1126 = vmul.f32 %v1061, %v807
      %v1127 = vmul.f32 %v1063, %v807
      %v1128 = vsub.f32 %v482, %v808
      %v1129 = vsub.f32 %v485, %v809
      %v1130 = vsub.f32 %v488, %v810
      %v1131 = vsub.f32 %v491, %v811
      %v1132 = vsub.f32 %v494, %v812
      %v1133 = vsub.f32 %v497, %v813
      %v1134 = vsub.f32 %v500, %v814
      %v1135 = vsub.f32 %v503, %v815
      %v1136 = vsub.f32 %v506, %v816
      %v1137 = vsub.f32 %v509, %v817
      %v1138 = vsub.f32 %v512, %v818
      %v1139 = vsub.f32 %v515, %v819
      %v1140 = vsub.f32 %v518, %v820
      %v1141 = vsub.f32 %v521, %v821
      %v1142 = vsub.f32 %v524, %v822
      %v1143 = vsub.f32 %v527, %v823
      %v1144 = vsub.f32 %v530, %v824
      %v1145 = vsub.f32 %v533, %v825
      %v1146 = vsub.f32 %v536, %v826
      %v1147 = vsub.f32 %v539, %v827
      %v1148 = vsub.f32 %v542, %v828
      %v1149 = vsub.f32 %v545, %v829
      %v1150 = vsub.f32 %v548, %v830
      %v1151 = vsub.f32 %v551, %v831
      %v1152 = vsub.f32 %v554, %v832
      %v1153 = vsub.f32 %v557, %v833
      %v1154 = vsub.f32 %v560, %v834
      %v1155 = vsub.f32 %v563, %v835
      %v1156 = vsub.f32 %v566, %v836
      %v1157 = vsub.f32 %v569, %v837
      %v1158 = vsub.f32 %v572, %v838
      %v1159 = vsub.f32 %v575, %v839
      %v1160 = vsub.f32 %v578, %v840
      %v1161 = vsub.f32 %v581, %v841
      %v1162 = vsub.f32 %v584, %v842
      %v1163 = vsub.f32 %v587, %v843
      %v1164 = vsub.f32 %v590, %v844
      %v1165 = vsub.f32 %v593, %v845
      %v1166 = vsub.f32 %v596, %v846
      %v1167 = vsub.f32 %v599, %v847
      %v1168 = vsub.f32 %v602, %v848
      %v1169 = vsub.f32 %v605, %v849
      %v1170 = vsub.f32 %v608, %v850
      %v1171 = vsub.f32 %v611, %v851
      %v1172 = vsub.f32 %v614, %v852
      %v1173 = vsub.f32 %v617, %v853
      %v1174 = vsub.f32 %v620, %v854
      %v1175 = vsub.f32 %v623, %v855
      %v1176 = vsub.f32 %v626, %v856
      %v1177 = vsub.f32 %v629, %v857
      %v1178 = vsub.f32 %v632, %v858
      %v1179 = vsub.f32 %v635, %v859
      %v1180 = vsub.f32 %v638, %v860
      %v1181 = vsub.f32 %v641, %v861
      %v1182 = vsub.f32 %v644, %v862
      %v1183 = vsub.f32 %v647, %v863
      %v1184 = vsub.f32 %v650, %v864
      %v1185 = vsub.f32 %v653, %v865
      %v1186 = vsub.f32 %v656, %v866
      %v1187 = vsub.f32 %v659, %v867
      %v1188 = vsub.f32 %v662, %v868
      %v1189 = vsub.f32 %v665, %v869
      %v1190 = vsub.f32 %v668, %v870
      %v1191 = vsub.f32 %v671, %v871
      %v1192 = vmul.f32 %v808, %v808
      %v1193 = vmul.f32 %v809, %v809
      %v1194 = vmul.f32 %v810, %v810
      %v1195 = vmul.f32 %v811, %v811
      %v1196 = vmul.f32 %v812, %v812
      %v1197 = vmul.f32 %v813, %v813
      %v1198 = vmul.f32 %v814, %v814
      %v1199 = vmul.f32 %v815, %v815
      %v1200 = vmul.f32 %v816, %v816
      %v1201 = vmul.f32 %v817, %v817
      %v1202 = vmul.f32 %v818, %v818
      %v1203 = vmul.f32 %v819, %v819
      %v1204 = vmul.f32 %v820, %v820
      %v1205 = vmul.f32 %v821, %v821
      %v1206 = vmul.f32 %v822, %v822
      %v1207 = vmul.f32 %v823, %v823
      %v1208 = vmul.f32 %v824, %v824
      %v1209 = vmul.f32 %v825, %v825
      %v1210 = vmul.f32 %v826, %v826
      %v1211 = vmul.f32 %v827, %v827
      %v1212 = vmul.f32 %v828, %v828
      %v1213 = vmul.f32 %v829, %v829
      %v1214 = vmul.f32 %v830, %v830
      %v1215 = vmul.f32 %v831, %v831
      %v1216 = vmul.f32 %v832, %v832
      %v1217 = vmul.f32 %v833, %v833
      %v1218 = vmul.f32 %v834, %v834
      %v1219 = vmul.f32 %v835, %v835
      %v1220 = vmul.f32 %v836, %v836
      %v1221 = vmul.f32 %v837, %v837
      %v1222 = vmul.f32 %v838, %v838
      %v1223 = vmul.f32 %v839, %v839
      %v1224 = vmul.f32 %v840, %v840
      %v1225 = vmul.f32 %v841, %v841
      %v1226 = vmul.f32 %v842, %v842
      %v1227 = vmul.f32 %v843, %v843
      %v1228 = vmul.f32 %v844, %v844
      %v1229 = vmul.f32 %v845, %v845
      %v1230 = vmul.f32 %v846, %v846
      %v1231 = vmul.f32 %v847, %v847
      %v1232 = vmul.f32 %v848, %v848
      %v1233 = vmul.f32 %v849, %v849
      %v1234 = vmul.f32 %v850, %v850
      %v1235 = vmul.f32 %v851, %v851
      %v1236 = vmul.f32 %v852, %v852
      %v1237 = vmul.f32 %v853, %v853
      %v1238 = vmul.f32 %v854, %v854
      %v1239 = vmul.f32 %v855, %v855
      %v1240 = vmul.f32 %v856, %v856
      %v1241 = vmul.f32 %v857, %v857
      %v1242 = vmul.f32 %v858, %v858
      %v1243 = vmul.f32 %v859, %v859
      %v1244 = vmul.f32 %v860, %v860
      %v1245 = vmul.f32 %v861, %v861
      %v1246 = vmul.f32 %v862, %v862
      %v1247 = vmul.f32 %v863, %v863
      %v1248 = vmul.f32 %v864, %v864
      %v1249 = vmul.f32 %v865, %v865
      %v1250 = vmul.f32 %v866, %v866
      %v1251 = vmul.f32 %v867, %v867
      %v1252 = vmul.f32 %v868, %v868
      %v1253 = vmul.f32 %v869, %v869
      %v1254 = vmul.f32 %v870, %v870
      %v1255 = vmul.f32 %v871, %v871
      %v1256 = vsub.f32 %v1064, %v1192
      %v1257 = vsub.f32 %v1065, %v1193
      %v1258 = vsub.f32 %v1066, %v1194
      %v1259 = vsub.f32 %v1067, %v1195
      %v1260 = vsub.f32 %v1068, %v1196
      %v1261 = vsub.f32 %v1069, %v1197
      %v1262 = vsub.f32 %v1070, %v1198
      %v1263 = vsub.f32 %v1071, %v1199
      %v1264 = vsub.f32 %v1072, %v1200
      %v1265 = vsub.f32 %v1073, %v1201
      %v1266 = vsub.f32 %v1074, %v1202
      %v1267 = vsub.f32 %v1075, %v1203
      %v1268 = vsub.f32 %v1076, %v1204
      %v1269 = vsub.f32 %v1077, %v1205
      %v1270 = vsub.f32 %v1078, %v1206
      %v1271 = vsub.f32 %v1079, %v1207
      %v1272 = vsub.f32 %v1080, %v1208
      %v1273 = vsub.f32 %v1081, %v1209
      %v1274 = vsub.f32 %v1082, %v1210
      %v1275 = vsub.f32 %v1083, %v1211
      %v1276 = vsub.f32 %v1084, %v1212
      %v1277 = vsub.f32 %v1085, %v1213
      %v1278 = vsub.f32 %v1086, %v1214
      %v1279 = vsub.f32 %v1087, %v1215
      %v1280 = vsub.f32 %v1088, %v1216
      %v1281 = vsub.f32 %v1089, %v1217
      %v1282 = vsub.f32 %v1090, %v1218
      %v1283 = vsub.f32 %v1091, %v1219
      %v1284 = vsub.f32 %v1092, %v1220
      %v1285 = vsub.f32 %v1093, %v1221
      %v1286 = vsub.f32 %v1094, %v1222
      %v1287 = vsub.f32 %v1095, %v1223
      %v1288 = vsub.f32 %v1096, %v1224
      %v1289 = vsub.f32 %v1097, %v1225
      %v1290 = vsub.f32 %v1098, %v1226
      %v1291 = vsub.f32 %v1099, %v1227
      %v1292 = vsub.f32 %v1100, %v1228
      %v1293 = vsub.f32 %v1101, %v1229
      %v1294 = vsub.f32 %v1102, %v1230
      %v1295 = vsub.f32 %v1103, %v1231
      %v1296 = vsub.f32 %v1104, %v1232
      %v1297 = vsub.f32 %v1105, %v1233
      %v1298 = vsub.f32 %v1106, %v1234
      %v1299 = vsub.f32 %v1107, %v1235
      %v1300 = vsub.f32 %v1108, %v1236
      %v1301 = vsub.f32 %v1109, %v1237
      %v1302 = vsub.f32 %v1110, %v1238
      %v1303 = vsub.f32 %v1111, %v1239
      %v1304 = vsub.f32 %v1112, %v1240
      %v1305 = vsub.f32 %v1113, %v1241
      %v1306 = vsub.f32 %v1114, %v1242
      %v1307 = vsub.f32 %v1115, %v1243
      %v1308 = vsub.f32 %v1116, %v1244
      %v1309 = vsub.f32 %v1117, %v1245
      %v1310 = vsub.f32 %v1118, %v1246
      %v1311 = vsub.f32 %v1119, %v1247
      %v1312 = vsub.f32 %v1120, %v1248
      %v1313 = vsub.f32 %v1121, %v1249
      %v1314 = vsub.f32 %v1122, %v1250
      %v1315 = vsub.f32 %v1123, %v1251
      %v1316 = vsub.f32 %v1124, %v1252
      %v1317 = vsub.f32 %v1125, %v1253
      %v1318 = vsub.f32 %v1126, %v1254
      %v1319 = vsub.f32 %v1127, %v1255
      %v1320 = vadd.f32 %v1256, 1e-05
      %v1321 = vadd.f32 %v1257, 1e-05
      %v1322 = vadd.f32 %v1258, 1e-05
      %v1323 = vadd.f32 %v1259, 1e-05
      %v1324 = vadd.f32 %v1260, 1e-05
      %v1325 = vadd.f32 %v1261, 1e-05
      %v1326 = vadd.f32 %v1262, 1e-05
      %v1327 = vadd.f32 %v1263, 1e-05
      %v1328 = vadd.f32 %v1264, 1e-05
      %v1329 = vadd.f32 %v1265, 1e-05
      %v1330 = vadd.f32 %v1266, 1e-05
      %v1331 = vadd.f32 %v1267, 1e-05
      %v1332 = vadd.f32 %v1268, 1e-05
      %v1333 = vadd.f32 %v1269, 1e-05
      %v1334 = vadd.f32 %v1270, 1e-05
      %v1335 = vadd.f32 %v1271, 1e-05
      %v1336 = vadd.f32 %v1272, 1e-05
      %v1337 = vadd.f32 %v1273, 1e-05
      %v1338 = vadd.f32 %v1274, 1e-05
      %v1339 = vadd.f32 %v1275, 1e-05
      %v1340 = vadd.f32 %v1276, 1e-05
      %v1341 = vadd.f32 %v1277, 1e-05
      %v1342 = vadd.f32 %v1278, 1e-05
      %v1343 = vadd.f32 %v1279, 1e-05
      %v1344 = vadd.f32 %v1280, 1e-05
      %v1345 = vadd.f32 %v1281, 1e-05
      %v1346 = vadd.f32 %v1282, 1e-05
      %v1347 = vadd.f32 %v1283, 1e-05
      %v1348 = vadd.f32 %v1284, 1e-05
      %v1349 = vadd.f32 %v1285, 1e-05
      %v1350 = vadd.f32 %v1286, 1e-05
      %v1351 = vadd.f32 %v1287, 1e-05
      %v1352 = vadd.f32 %v1288, 1e-05
      %v1353 = vadd.f32 %v1289, 1e-05
      %v1354 = vadd.f32 %v1290, 1e-05
      %v1355 = vadd.f32 %v1291, 1e-05
      %v1356 = vadd.f32 %v1292, 1e-05
      %v1357 = vadd.f32 %v1293, 1e-05
      %v1358 = vadd.f32 %v1294, 1e-05
      %v1359 = vadd.f32 %v1295, 1e-05
      %v1360 = vadd.f32 %v1296, 1e-05
      %v1361 = vadd.f32 %v1297, 1e-05
      %v1362 = vadd.f32 %v1298, 1e-05
      %v1363 = vadd.f32 %v1299, 1e-05
      %v1364 = vadd.f32 %v1300, 1e-05
      %v1365 = vadd.f32 %v1301, 1e-05
      %v1366 = vadd.f32 %v1302, 1e-05
      %v1367 = vadd.f32 %v1303, 1e-05
      %v1368 = vadd.f32 %v1304, 1e-05
      %v1369 = vadd.f32 %v1305, 1e-05
      %v1370 = vadd.f32 %v1306, 1e-05
      %v1371 = vadd.f32 %v1307, 1e-05
      %v1372 = vadd.f32 %v1308, 1e-05
      %v1373 = vadd.f32 %v1309, 1e-05
      %v1374 = vadd.f32 %v1310, 1e-05
      %v1375 = vadd.f32 %v1311, 1e-05
      %v1376 = vadd.f32 %v1312, 1e-05
      %v1377 = vadd.f32 %v1313, 1e-05
      %v1378 = vadd.f32 %v1314, 1e-05
      %v1379 = vadd.f32 %v1315, 1e-05
      %v1380 = vadd.f32 %v1316, 1e-05
      %v1381 = vadd.f32 %v1317, 1e-05
      %v1382 = vadd.f32 %v1318, 1e-05
      %v1383 = vadd.f32 %v1319, 1e-05
      %v1384 = vrsqrt.pop %v1320
      %v1385 = vmul.f32 %v1384, %v1320
      %v1386 = vmul.f32 %v1385, %v1384
      %v1387 = vmul.f32 0.5, %v1386
      %v1388 = vsub.f32 1.5, %v1387
      %v1389 = vmul.f32 %v1384, %v1388
      %vm1390 = vweird.f32 %v1320
      %vm1391 = vweird.f32 %v1384
      %vm1392 = vmor %vm1390, %vm1391
      %v1393 = vsel %vm1392, %v1384, %v1389
      %v1394 = vrsqrt.pop %v1321
      %v1395 = vmul.f32 %v1394, %v1321
      %v1396 = vmul.f32 %v1395, %v1394
      %v1397 = vmul.f32 0.5, %v1396
      %v1398 = vsub.f32 1.5, %v1397
      %v1399 = vmul.f32 %v1394, %v1398
      %vm1400 = vweird.f32 %v1321
      %vm1401 = vweird.f32 %v1394
      %vm1402 = vmor %vm1400, %vm1401
      %v1403 = vsel %vm1402, %v1394, %v1399
      %v1404 = vrsqrt.pop %v1322
      %v1405 = vmul.f32 %v1404, %v1322
      %v1406 = vmul.f32 %v1405, %v1404
      %v1407 = vmul.f32 0.5, %v1406
      %v1408 = vsub.f32 1.5, %v1407
      %v1409 = vmul.f32 %v1404, %v1408
      %vm1410 = vweird.f32 %v1322
      %vm1411 = vweird.f32 %v1404
      %vm1412 = vmor %vm1410, %vm1411
      %v1413 = vsel %vm1412, %v1404, %v1409
      %v1414 = vrsqrt.pop %v1323
      %v1415 = vmul.f32 %v1414, %v1323
      %v1416 = vmul.f32 %v1415, %v1414
      %v1417 = vmul.f32 0.5, %v1416
      %v1418 = vsub.f32 1.5, %v1417
      %v1419 = vmul.f32 %v1414, %v1418
      %vm1420 = vweird.f32 %v1323
      %vm1421 = vweird.f32 %v1414
      %vm1422 = vmor %vm1420, %vm1421
      %v1423 = vsel %vm1422, %v1414, %v1419
      %v1424 = vrsqrt.pop %v1324
      %v1425 = vmul.f32 %v1424, %v1324
      %v1426 = vmul.f32 %v1425, %v1424
      %v1427 = vmul.f32 0.5, %v1426
      %v1428 = vsub.f32 1.5, %v1427
      %v1429 = vmul.f32 %v1424, %v1428
      %vm1430 = vweird.f32 %v1324
      %vm1431 = vweird.f32 %v1424
      %vm1432 = vmor %vm1430, %vm1431
      %v1433 = vsel %vm1432, %v1424, %v1429
      %v1434 = vrsqrt.pop %v1325
      %v1435 = vmul.f32 %v1434, %v1325
      %v1436 = vmul.f32 %v1435, %v1434
      %v1437 = vmul.f32 0.5, %v1436
      %v1438 = vsub.f32 1.5, %v1437
      %v1439 = vmul.f32 %v1434, %v1438
      %vm1440 = vweird.f32 %v1325
      %vm1441 = vweird.f32 %v1434
      %vm1442 = vmor %vm1440, %vm1441
      %v1443 = vsel %vm1442, %v1434, %v1439
      %v1444 = vrsqrt.pop %v1326
      %v1445 = vmul.f32 %v1444, %v1326
      %v1446 = vmul.f32 %v1445, %v1444
      %v1447 = vmul.f32 0.5, %v1446
      %v1448 = vsub.f32 1.5, %v1447
      %v1449 = vmul.f32 %v1444, %v1448
      %vm1450 = vweird.f32 %v1326
      %vm1451 = vweird.f32 %v1444
      %vm1452 = vmor %vm1450, %vm1451
      %v1453 = vsel %vm1452, %v1444, %v1449
      %v1454 = vrsqrt.pop %v1327
      %v1455 = vmul.f32 %v1454, %v1327
      %v1456 = vmul.f32 %v1455, %v1454
      %v1457 = vmul.f32 0.5, %v1456
      %v1458 = vsub.f32 1.5, %v1457
      %v1459 = vmul.f32 %v1454, %v1458
      %vm1460 = vweird.f32 %v1327
      %vm1461 = vweird.f32 %v1454
      %vm1462 = vmor %vm1460, %vm1461
      %v1463 = vsel %vm1462, %v1454, %v1459
      %v1464 = vrsqrt.pop %v1328
      %v1465 = vmul.f32 %v1464, %v1328
      %v1466 = vmul.f32 %v1465, %v1464
      %v1467 = vmul.f32 0.5, %v1466
      %v1468 = vsub.f32 1.5, %v1467
      %v1469 = vmul.f32 %v1464, %v1468
      %vm1470 = vweird.f32 %v1328
      %vm1471 = vweird.f32 %v1464
      %vm1472 = vmor %vm1470, %vm1471
      %v1473 = vsel %vm1472, %v1464, %v1469
      %v1474 = vrsqrt.pop %v1329
      %v1475 = vmul.f32 %v1474, %v1329
      %v1476 = vmul.f32 %v1475, %v1474
      %v1477 = vmul.f32 0.5, %v1476
      %v1478 = vsub.f32 1.5, %v1477
      %v1479 = vmul.f32 %v1474, %v1478
      %vm1480 = vweird.f32 %v1329
      %vm1481 = vweird.f32 %v1474
      %vm1482 = vmor %vm1480, %vm1481
      %v1483 = vsel %vm1482, %v1474, %v1479
      %v1484 = vrsqrt.pop %v1330
      %v1485 = vmul.f32 %v1484, %v1330
      %v1486 = vmul.f32 %v1485, %v1484
      %v1487 = vmul.f32 0.5, %v1486
      %v1488 = vsub.f32 1.5, %v1487
      %v1489 = vmul.f32 %v1484, %v1488
      %vm1490 = vweird.f32 %v1330
      %vm1491 = vweird.f32 %v1484
      %vm1492 = vmor %vm1490, %vm1491
      %v1493 = vsel %vm1492, %v1484, %v1489
      %v1494 = vrsqrt.pop %v1331
      %v1495 = vmul.f32 %v1494, %v1331
      %v1496 = vmul.f32 %v1495, %v1494
      %v1497 = vmul.f32 0.5, %v1496
      %v1498 = vsub.f32 1.5, %v1497
      %v1499 = vmul.f32 %v1494, %v1498
      %vm1500 = vweird.f32 %v1331
      %vm1501 = vweird.f32 %v1494
      %vm1502 = vmor %vm1500, %vm1501
      %v1503 = vsel %vm1502, %v1494, %v1499
      %v1504 = vrsqrt.pop %v1332
      %v1505 = vmul.f32 %v1504, %v1332
      %v1506 = vmul.f32 %v1505, %v1504
      %v1507 = vmul.f32 0.5, %v1506
      %v1508 = vsub.f32 1.5, %v1507
      %v1509 = vmul.f32 %v1504, %v1508
      %vm1510 = vweird.f32 %v1332
      %vm1511 = vweird.f32 %v1504
      %vm1512 = vmor %vm1510, %vm1511
      %v1513 = vsel %vm1512, %v1504, %v1509
      %v1514 = vrsqrt.pop %v1333
      %v1515 = vmul.f32 %v1514, %v1333
      %v1516 = vmul.f32 %v1515, %v1514
      %v1517 = vmul.f32 0.5, %v1516
      %v1518 = vsub.f32 1.5, %v1517
      %v1519 = vmul.f32 %v1514, %v1518
      %vm1520 = vweird.f32 %v1333
      %vm1521 = vweird.f32 %v1514
      %vm1522 = vmor %vm1520, %vm1521
      %v1523 = vsel %vm1522, %v1514, %v1519
      %v1524 = vrsqrt.pop %v1334
      %v1525 = vmul.f32 %v1524, %v1334
      %v1526 = vmul.f32 %v1525, %v1524
      %v1527 = vmul.f32 0.5, %v1526
      %v1528 = vsub.f32 1.5, %v1527
      %v1529 = vmul.f32 %v1524, %v1528
      %vm1530 = vweird.f32 %v1334
      %vm1531 = vweird.f32 %v1524
      %vm1532 = vmor %vm1530, %vm1531
      %v1533 = vsel %vm1532, %v1524, %v1529
      %v1534 = vrsqrt.pop %v1335
      %v1535 = vmul.f32 %v1534, %v1335
      %v1536 = vmul.f32 %v1535, %v1534
      %v1537 = vmul.f32 0.5, %v1536
      %v1538 = vsub.f32 1.5, %v1537
      %v1539 = vmul.f32 %v1534, %v1538
      %vm1540 = vweird.f32 %v1335
      %vm1541 = vweird.f32 %v1534
      %vm1542 = vmor %vm1540, %vm1541
      %v1543 = vsel %vm1542, %v1534, %v1539
      %v1544 = vrsqrt.pop %v1336
      %v1545 = vmul.f32 %v1544, %v1336
      %v1546 = vmul.f32 %v1545, %v1544
      %v1547 = vmul.f32 0.5, %v1546
      %v1548 = vsub.f32 1.5, %v1547
      %v1549 = vmul.f32 %v1544, %v1548
      %vm1550 = vweird.f32 %v1336
      %vm1551 = vweird.f32 %v1544
      %vm1552 = vmor %vm1550, %vm1551
      %v1553 = vsel %vm1552, %v1544, %v1549
      %v1554 = vrsqrt.pop %v1337
      %v1555 = vmul.f32 %v1554, %v1337
      %v1556 = vmul.f32 %v1555, %v1554
      %v1557 = vmul.f32 0.5, %v1556
      %v1558 = vsub.f32 1.5, %v1557
      %v1559 = vmul.f32 %v1554, %v1558
      %vm1560 = vweird.f32 %v1337
      %vm1561 = vweird.f32 %v1554
      %vm1562 = vmor %vm1560, %vm1561
      %v1563 = vsel %vm1562, %v1554, %v1559
      %v1564 = vrsqrt.pop %v1338
      %v1565 = vmul.f32 %v1564, %v1338
      %v1566 = vmul.f32 %v1565, %v1564
      %v1567 = vmul.f32 0.5, %v1566
      %v1568 = vsub.f32 1.5, %v1567
      %v1569 = vmul.f32 %v1564, %v1568
      %vm1570 = vweird.f32 %v1338
      %vm1571 = vweird.f32 %v1564
      %vm1572 = vmor %vm1570, %vm1571
      %v1573 = vsel %vm1572, %v1564, %v1569
      %v1574 = vrsqrt.pop %v1339
      %v1575 = vmul.f32 %v1574, %v1339
      %v1576 = vmul.f32 %v1575, %v1574
      %v1577 = vmul.f32 0.5, %v1576
      %v1578 = vsub.f32 1.5, %v1577
      %v1579 = vmul.f32 %v1574, %v1578
      %vm1580 = vweird.f32 %v1339
      %vm1581 = vweird.f32 %v1574
      %vm1582 = vmor %vm1580, %vm1581
      %v1583 = vsel %vm1582, %v1574, %v1579
      %v1584 = vrsqrt.pop %v1340
      %v1585 = vmul.f32 %v1584, %v1340
      %v1586 = vmul.f32 %v1585, %v1584
      %v1587 = vmul.f32 0.5, %v1586
      %v1588 = vsub.f32 1.5, %v1587
      %v1589 = vmul.f32 %v1584, %v1588
      %vm1590 = vweird.f32 %v1340
      %vm1591 = vweird.f32 %v1584
      %vm1592 = vmor %vm1590, %vm1591
      %v1593 = vsel %vm1592, %v1584, %v1589
      %v1594 = vrsqrt.pop %v1341
      %v1595 = vmul.f32 %v1594, %v1341
      %v1596 = vmul.f32 %v1595, %v1594
      %v1597 = vmul.f32 0.5, %v1596
      %v1598 = vsub.f32 1.5, %v1597
      %v1599 = vmul.f32 %v1594, %v1598
      %vm1600 = vweird.f32 %v1341
      %vm1601 = vweird.f32 %v1594
      %vm1602 = vmor %vm1600, %vm1601
      %v1603 = vsel %vm1602, %v1594, %v1599
      %v1604 = vrsqrt.pop %v1342
      %v1605 = vmul.f32 %v1604, %v1342
      %v1606 = vmul.f32 %v1605, %v1604
      %v1607 = vmul.f32 0.5, %v1606
      %v1608 = vsub.f32 1.5, %v1607
      %v1609 = vmul.f32 %v1604, %v1608
      %vm1610 = vweird.f32 %v1342
      %vm1611 = vweird.f32 %v1604
      %vm1612 = vmor %vm1610, %vm1611
      %v1613 = vsel %vm1612, %v1604, %v1609
      %v1614 = vrsqrt.pop %v1343
      %v1615 = vmul.f32 %v1614, %v1343
      %v1616 = vmul.f32 %v1615, %v1614
      %v1617 = vmul.f32 0.5, %v1616
      %v1618 = vsub.f32 1.5, %v1617
      %v1619 = vmul.f32 %v1614, %v1618
      %vm1620 = vweird.f32 %v1343
      %vm1621 = vweird.f32 %v1614
      %vm1622 = vmor %vm1620, %vm1621
      %v1623 = vsel %vm1622, %v1614, %v1619
      %v1624 = vrsqrt.pop %v1344
      %v1625 = vmul.f32 %v1624, %v1344
      %v1626 = vmul.f32 %v1625, %v1624
      %v1627 = vmul.f32 0.5, %v1626
      %v1628 = vsub.f32 1.5, %v1627
      %v1629 = vmul.f32 %v1624, %v1628
      %vm1630 = vweird.f32 %v1344
      %vm1631 = vweird.f32 %v1624
      %vm1632 = vmor %vm1630, %vm1631
      %v1633 = vsel %vm1632, %v1624, %v1629
      %v1634 = vrsqrt.pop %v1345
      %v1635 = vmul.f32 %v1634, %v1345
      %v1636 = vmul.f32 %v1635, %v1634
      %v1637 = vmul.f32 0.5, %v1636
      %v1638 = vsub.f32 1.5, %v1637
      %v1639 = vmul.f32 %v1634, %v1638
      %vm1640 = vweird.f32 %v1345
      %vm1641 = vweird.f32 %v1634
      %vm1642 = vmor %vm1640, %vm1641
      %v1643 = vsel %vm1642, %v1634, %v1639
      %v1644 = vrsqrt.pop %v1346
      %v1645 = vmul.f32 %v1644, %v1346
      %v1646 = vmul.f32 %v1645, %v1644
      %v1647 = vmul.f32 0.5, %v1646
      %v1648 = vsub.f32 1.5, %v1647
      %v1649 = vmul.f32 %v1644, %v1648
      %vm1650 = vweird.f32 %v1346
      %vm1651 = vweird.f32 %v1644
      %vm1652 = vmor %vm1650, %vm1651
      %v1653 = vsel %vm1652, %v1644, %v1649
      %v1654 = vrsqrt.pop %v1347
      %v1655 = vmul.f32 %v1654, %v1347
      %v1656 = vmul.f32 %v1655, %v1654
      %v1657 = vmul.f32 0.5, %v1656
      %v1658 = vsub.f32 1.5, %v1657
      %v1659 = vmul.f32 %v1654, %v1658
      %vm1660 = vweird.f32 %v1347
      %vm1661 = vweird.f32 %v1654
      %vm1662 = vmor %vm1660, %vm1661
      %v1663 = vsel %vm1662, %v1654, %v1659
      %v1664 = vrsqrt.pop %v1348
      %v1665 = vmul.f32 %v1664, %v1348
      %v1666 = vmul.f32 %v1665, %v1664
      %v1667 = vmul.f32 0.5, %v1666
      %v1668 = vsub.f32 1.5, %v1667
      %v1669 = vmul.f32 %v1664, %v1668
      %vm1670 = vweird.f32 %v1348
      %vm1671 = vweird.f32 %v1664
      %vm1672 = vmor %vm1670, %vm1671
      %v1673 = vsel %vm1672, %v1664, %v1669
      %v1674 = vrsqrt.pop %v1349
      %v1675 = vmul.f32 %v1674, %v1349
      %v1676 = vmul.f32 %v1675, %v1674
      %v1677 = vmul.f32 0.5, %v1676
      %v1678 = vsub.f32 1.5, %v1677
      %v1679 = vmul.f32 %v1674, %v1678
      %vm1680 = vweird.f32 %v1349
      %vm1681 = vweird.f32 %v1674
      %vm1682 = vmor %vm1680, %vm1681
      %v1683 = vsel %vm1682, %v1674, %v1679
      %v1684 = vrsqrt.pop %v1350
      %v1685 = vmul.f32 %v1684, %v1350
      %v1686 = vmul.f32 %v1685, %v1684
      %v1687 = vmul.f32 0.5, %v1686
      %v1688 = vsub.f32 1.5, %v1687
      %v1689 = vmul.f32 %v1684, %v1688
      %vm1690 = vweird.f32 %v1350
      %vm1691 = vweird.f32 %v1684
      %vm1692 = vmor %vm1690, %vm1691
      %v1693 = vsel %vm1692, %v1684, %v1689
      %v1694 = vrsqrt.pop %v1351
      %v1695 = vmul.f32 %v1694, %v1351
      %v1696 = vmul.f32 %v1695, %v1694
      %v1697 = vmul.f32 0.5, %v1696
      %v1698 = vsub.f32 1.5, %v1697
      %v1699 = vmul.f32 %v1694, %v1698
      %vm1700 = vweird.f32 %v1351
      %vm1701 = vweird.f32 %v1694
      %vm1702 = vmor %vm1700, %vm1701
      %v1703 = vsel %vm1702, %v1694, %v1699
      %v1704 = vrsqrt.pop %v1352
      %v1705 = vmul.f32 %v1704, %v1352
      %v1706 = vmul.f32 %v1705, %v1704
      %v1707 = vmul.f32 0.5, %v1706
      %v1708 = vsub.f32 1.5, %v1707
      %v1709 = vmul.f32 %v1704, %v1708
      %vm1710 = vweird.f32 %v1352
      %vm1711 = vweird.f32 %v1704
      %vm1712 = vmor %vm1710, %vm1711
      %v1713 = vsel %vm1712, %v1704, %v1709
      %v1714 = vrsqrt.pop %v1353
      %v1715 = vmul.f32 %v1714, %v1353
      %v1716 = vmul.f32 %v1715, %v1714
      %v1717 = vmul.f32 0.5, %v1716
      %v1718 = vsub.f32 1.5, %v1717
      %v1719 = vmul.f32 %v1714, %v1718
      %vm1720 = vweird.f32 %v1353
      %vm1721 = vweird.f32 %v1714
      %vm1722 = vmor %vm1720, %vm1721
      %v1723 = vsel %vm1722, %v1714, %v1719
      %v1724 = vrsqrt.pop %v1354
      %v1725 = vmul.f32 %v1724, %v1354
      %v1726 = vmul.f32 %v1725, %v1724
      %v1727 = vmul.f32 0.5, %v1726
      %v1728 = vsub.f32 1.5, %v1727
      %v1729 = vmul.f32 %v1724, %v1728
      %vm1730 = vweird.f32 %v1354
      %vm1731 = vweird.f32 %v1724
      %vm1732 = vmor %vm1730, %vm1731
      %v1733 = vsel %vm1732, %v1724, %v1729
      %v1734 = vrsqrt.pop %v1355
      %v1735 = vmul.f32 %v1734, %v1355
      %v1736 = vmul.f32 %v1735, %v1734
      %v1737 = vmul.f32 0.5, %v1736
      %v1738 = vsub.f32 1.5, %v1737
      %v1739 = vmul.f32 %v1734, %v1738
      %vm1740 = vweird.f32 %v1355
      %vm1741 = vweird.f32 %v1734
      %vm1742 = vmor %vm1740, %vm1741
      %v1743 = vsel %vm1742, %v1734, %v1739
      %v1744 = vrsqrt.pop %v1356
      %v1745 = vmul.f32 %v1744, %v1356
      %v1746 = vmul.f32 %v1745, %v1744
      %v1747 = vmul.f32 0.5, %v1746
      %v1748 = vsub.f32 1.5, %v1747
      %v1749 = vmul.f32 %v1744, %v1748
      %vm1750 = vweird.f32 %v1356
      %vm1751 = vweird.f32 %v1744
      %vm1752 = vmor %vm1750, %vm1751
      %v1753 = vsel %vm1752, %v1744, %v1749
      %v1754 = vrsqrt.pop %v1357
      %v1755 = vmul.f32 %v1754, %v1357
      %v1756 = vmul.f32 %v1755, %v1754
      %v1757 = vmul.f32 0.5, %v1756
      %v1758 = vsub.f32 1.5, %v1757
      %v1759 = vmul.f32 %v1754, %v1758
      %vm1760 = vweird.f32 %v1357
      %vm1761 = vweird.f32 %v1754
      %vm1762 = vmor %vm1760, %vm1761
      %v1763 = vsel %vm1762, %v1754, %v1759
      %v1764 = vrsqrt.pop %v1358
      %v1765 = vmul.f32 %v1764, %v1358
      %v1766 = vmul.f32 %v1765, %v1764
      %v1767 = vmul.f32 0.5, %v1766
      %v1768 = vsub.f32 1.5, %v1767
      %v1769 = vmul.f32 %v1764, %v1768
      %vm1770 = vweird.f32 %v1358
      %vm1771 = vweird.f32 %v1764
      %vm1772 = vmor %vm1770, %vm1771
      %v1773 = vsel %vm1772, %v1764, %v1769
      %v1774 = vrsqrt.pop %v1359
      %v1775 = vmul.f32 %v1774, %v1359
      %v1776 = vmul.f32 %v1775, %v1774
      %v1777 = vmul.f32 0.5, %v1776
      %v1778 = vsub.f32 1.5, %v1777
      %v1779 = vmul.f32 %v1774, %v1778
      %vm1780 = vweird.f32 %v1359
      %vm1781 = vweird.f32 %v1774
      %vm1782 = vmor %vm1780, %vm1781
      %v1783 = vsel %vm1782, %v1774, %v1779
      %v1784 = vrsqrt.pop %v1360
      %v1785 = vmul.f32 %v1784, %v1360
      %v1786 = vmul.f32 %v1785, %v1784
      %v1787 = vmul.f32 0.5, %v1786
      %v1788 = vsub.f32 1.5, %v1787
      %v1789 = vmul.f32 %v1784, %v1788
      %vm1790 = vweird.f32 %v1360
      %vm1791 = vweird.f32 %v1784
      %vm1792 = vmor %vm1790, %vm1791
      %v1793 = vsel %vm1792, %v1784, %v1789
      %v1794 = vrsqrt.pop %v1361
      %v1795 = vmul.f32 %v1794, %v1361
      %v1796 = vmul.f32 %v1795, %v1794
      %v1797 = vmul.f32 0.5, %v1796
      %v1798 = vsub.f32 1.5, %v1797
      %v1799 = vmul.f32 %v1794, %v1798
      %vm1800 = vweird.f32 %v1361
      %vm1801 = vweird.f32 %v1794
      %vm1802 = vmor %vm1800, %vm1801
      %v1803 = vsel %vm1802, %v1794, %v1799
      %v1804 = vrsqrt.pop %v1362
      %v1805 = vmul.f32 %v1804, %v1362
      %v1806 = vmul.f32 %v1805, %v1804
      %v1807 = vmul.f32 0.5, %v1806
      %v1808 = vsub.f32 1.5, %v1807
      %v1809 = vmul.f32 %v1804, %v1808
      %vm1810 = vweird.f32 %v1362
      %vm1811 = vweird.f32 %v1804
      %vm1812 = vmor %vm1810, %vm1811
      %v1813 = vsel %vm1812, %v1804, %v1809
      %v1814 = vrsqrt.pop %v1363
      %v1815 = vmul.f32 %v1814, %v1363
      %v1816 = vmul.f32 %v1815, %v1814
      %v1817 = vmul.f32 0.5, %v1816
      %v1818 = vsub.f32 1.5, %v1817
      %v1819 = vmul.f32 %v1814, %v1818
      %vm1820 = vweird.f32 %v1363
      %vm1821 = vweird.f32 %v1814
      %vm1822 = vmor %vm1820, %vm1821
      %v1823 = vsel %vm1822, %v1814, %v1819
      %v1824 = vrsqrt.pop %v1364
      %v1825 = vmul.f32 %v1824, %v1364
      %v1826 = vmul.f32 %v1825, %v1824
      %v1827 = vmul.f32 0.5, %v1826
      %v1828 = vsub.f32 1.5, %v1827
      %v1829 = vmul.f32 %v1824, %v1828
      %vm1830 = vweird.f32 %v1364
      %vm1831 = vweird.f32 %v1824
      %vm1832 = vmor %vm1830, %vm1831
      %v1833 = vsel %vm1832, %v1824, %v1829
      %v1834 = vrsqrt.pop %v1365
      %v1835 = vmul.f32 %v1834, %v1365
      %v1836 = vmul.f32 %v1835, %v1834
      %v1837 = vmul.f32 0.5, %v1836
      %v1838 = vsub.f32 1.5, %v1837
      %v1839 = vmul.f32 %v1834, %v1838
      %vm1840 = vweird.f32 %v1365
      %vm1841 = vweird.f32 %v1834
      %vm1842 = vmor %vm1840, %vm1841
      %v1843 = vsel %vm1842, %v1834, %v1839
      %v1844 = vrsqrt.pop %v1366
      %v1845 = vmul.f32 %v1844, %v1366
      %v1846 = vmul.f32 %v1845, %v1844
      %v1847 = vmul.f32 0.5, %v1846
      %v1848 = vsub.f32 1.5, %v1847
      %v1849 = vmul.f32 %v1844, %v1848
      %vm1850 = vweird.f32 %v1366
      %vm1851 = vweird.f32 %v1844
      %vm1852 = vmor %vm1850, %vm1851
      %v1853 = vsel %vm1852, %v1844, %v1849
      %v1854 = vrsqrt.pop %v1367
      %v1855 = vmul.f32 %v1854, %v1367
      %v1856 = vmul.f32 %v1855, %v1854
      %v1857 = vmul.f32 0.5, %v1856
      %v1858 = vsub.f32 1.5, %v1857
      %v1859 = vmul.f32 %v1854, %v1858
      %vm1860 = vweird.f32 %v1367
      %vm1861 = vweird.f32 %v1854
      %vm1862 = vmor %vm1860, %vm1861
      %v1863 = vsel %vm1862, %v1854, %v1859
      %v1864 = vrsqrt.pop %v1368
      %v1865 = vmul.f32 %v1864, %v1368
      %v1866 = vmul.f32 %v1865, %v1864
      %v1867 = vmul.f32 0.5, %v1866
      %v1868 = vsub.f32 1.5, %v1867
      %v1869 = vmul.f32 %v1864, %v1868
      %vm1870 = vweird.f32 %v1368
      %vm1871 = vweird.f32 %v1864
      %vm1872 = vmor %vm1870, %vm1871
      %v1873 = vsel %vm1872, %v1864, %v1869
      %v1874 = vrsqrt.pop %v1369
      %v1875 = vmul.f32 %v1874, %v1369
      %v1876 = vmul.f32 %v1875, %v1874
      %v1877 = vmul.f32 0.5, %v1876
      %v1878 = vsub.f32 1.5, %v1877
      %v1879 = vmul.f32 %v1874, %v1878
      %vm1880 = vweird.f32 %v1369
      %vm1881 = vweird.f32 %v1874
      %vm1882 = vmor %vm1880, %vm1881
      %v1883 = vsel %vm1882, %v1874, %v1879
      %v1884 = vrsqrt.pop %v1370
      %v1885 = vmul.f32 %v1884, %v1370
      %v1886 = vmul.f32 %v1885, %v1884
      %v1887 = vmul.f32 0.5, %v1886
      %v1888 = vsub.f32 1.5, %v1887
      %v1889 = vmul.f32 %v1884, %v1888
      %vm1890 = vweird.f32 %v1370
      %vm1891 = vweird.f32 %v1884
      %vm1892 = vmor %vm1890, %vm1891
      %v1893 = vsel %vm1892, %v1884, %v1889
      %v1894 = vrsqrt.pop %v1371
      %v1895 = vmul.f32 %v1894, %v1371
      %v1896 = vmul.f32 %v1895, %v1894
      %v1897 = vmul.f32 0.5, %v1896
      %v1898 = vsub.f32 1.5, %v1897
      %v1899 = vmul.f32 %v1894, %v1898
      %vm1900 = vweird.f32 %v1371
      %vm1901 = vweird.f32 %v1894
      %vm1902 = vmor %vm1900, %vm1901
      %v1903 = vsel %vm1902, %v1894, %v1899
      %v1904 = vrsqrt.pop %v1372
      %v1905 = vmul.f32 %v1904, %v1372
      %v1906 = vmul.f32 %v1905, %v1904
      %v1907 = vmul.f32 0.5, %v1906
      %v1908 = vsub.f32 1.5, %v1907
      %v1909 = vmul.f32 %v1904, %v1908
      %vm1910 = vweird.f32 %v1372
      %vm1911 = vweird.f32 %v1904
      %vm1912 = vmor %vm1910, %vm1911
      %v1913 = vsel %vm1912, %v1904, %v1909
      %v1914 = vrsqrt.pop %v1373
      %v1915 = vmul.f32 %v1914, %v1373
      %v1916 = vmul.f32 %v1915, %v1914
      %v1917 = vmul.f32 0.5, %v1916
      %v1918 = vsub.f32 1.5, %v1917
      %v1919 = vmul.f32 %v1914, %v1918
      %vm1920 = vweird.f32 %v1373
      %vm1921 = vweird.f32 %v1914
      %vm1922 = vmor %vm1920, %vm1921
      %v1923 = vsel %vm1922, %v1914, %v1919
      %v1924 = vrsqrt.pop %v1374
      %v1925 = vmul.f32 %v1924, %v1374
      %v1926 = vmul.f32 %v1925, %v1924
      %v1927 = vmul.f32 0.5, %v1926
      %v1928 = vsub.f32 1.5, %v1927
      %v1929 = vmul.f32 %v1924, %v1928
      %vm1930 = vweird.f32 %v1374
      %vm1931 = vweird.f32 %v1924
      %vm1932 = vmor %vm1930, %vm1931
      %v1933 = vsel %vm1932, %v1924, %v1929
      %v1934 = vrsqrt.pop %v1375
      %v1935 = vmul.f32 %v1934, %v1375
      %v1936 = vmul.f32 %v1935, %v1934
      %v1937 = vmul.f32 0.5, %v1936
      %v1938 = vsub.f32 1.5, %v1937
      %v1939 = vmul.f32 %v1934, %v1938
      %vm1940 = vweird.f32 %v1375
      %vm1941 = vweird.f32 %v1934
      %vm1942 = vmor %vm1940, %vm1941
      %v1943 = vsel %vm1942, %v1934, %v1939
      %v1944 = vrsqrt.pop %v1376
      %v1945 = vmul.f32 %v1944, %v1376
      %v1946 = vmul.f32 %v1945, %v1944
      %v1947 = vmul.f32 0.5, %v1946
      %v1948 = vsub.f32 1.5, %v1947
      %v1949 = vmul.f32 %v1944, %v1948
      %vm1950 = vweird.f32 %v1376
      %vm1951 = vweird.f32 %v1944
      %vm1952 = vmor %vm1950, %vm1951
      %v1953 = vsel %vm1952, %v1944, %v1949
      %v1954 = vrsqrt.pop %v1377
      %v1955 = vmul.f32 %v1954, %v1377
      %v1956 = vmul.f32 %v1955, %v1954
      %v1957 = vmul.f32 0.5, %v1956
      %v1958 = vsub.f32 1.5, %v1957
      %v1959 = vmul.f32 %v1954, %v1958
      %vm1960 = vweird.f32 %v1377
      %vm1961 = vweird.f32 %v1954
      %vm1962 = vmor %vm1960, %vm1961
      %v1963 = vsel %vm1962, %v1954, %v1959
      %v1964 = vrsqrt.pop %v1378
      %v1965 = vmul.f32 %v1964, %v1378
      %v1966 = vmul.f32 %v1965, %v1964
      %v1967 = vmul.f32 0.5, %v1966
      %v1968 = vsub.f32 1.5, %v1967
      %v1969 = vmul.f32 %v1964, %v1968
      %vm1970 = vweird.f32 %v1378
      %vm1971 = vweird.f32 %v1964
      %vm1972 = vmor %vm1970, %vm1971
      %v1973 = vsel %vm1972, %v1964, %v1969
      %v1974 = vrsqrt.pop %v1379
      %v1975 = vmul.f32 %v1974, %v1379
      %v1976 = vmul.f32 %v1975, %v1974
      %v1977 = vmul.f32 0.5, %v1976
      %v1978 = vsub.f32 1.5, %v1977
      %v1979 = vmul.f32 %v1974, %v1978
      %vm1980 = vweird.f32 %v1379
      %vm1981 = vweird.f32 %v1974
      %vm1982 = vmor %vm1980, %vm1981
      %v1983 = vsel %vm1982, %v1974, %v1979
      %v1984 = vrsqrt.pop %v1380
      %v1985 = vmul.f32 %v1984, %v1380
      %v1986 = vmul.f32 %v1985, %v1984
      %v1987 = vmul.f32 0.5, %v1986
      %v1988 = vsub.f32 1.5, %v1987
      %v1989 = vmul.f32 %v1984, %v1988
      %vm1990 = vweird.f32 %v1380
      %vm1991 = vweird.f32 %v1984
      %vm1992 = vmor %vm1990, %vm1991
      %v1993 = vsel %vm1992, %v1984, %v1989
      %v1994 = vrsqrt.pop %v1381
      %v1995 = vmul.f32 %v1994, %v1381
      %v1996 = vmul.f32 %v1995, %v1994
      %v1997 = vmul.f32 0.5, %v1996
      %v1998 = vsub.f32 1.5, %v1997
      %v1999 = vmul.f32 %v1994, %v1998
      %vm2000 = vweird.f32 %v1381
      %vm2001 = vweird.f32 %v1994
      %vm2002 = vmor %vm2000, %vm2001
      %v2003 = vsel %vm2002, %v1994, %v1999
      %v2004 = vrsqrt.pop %v1382
      %v2005 = vmul.f32 %v2004, %v1382
      %v2006 = vmul.f32 %v2005, %v2004
      %v2007 = vmul.f32 0.5, %v2006
      %v2008 = vsub.f32 1.5, %v2007
      %v2009 = vmul.f32 %v2004, %v2008
      %vm2010 = vweird.f32 %v1382
      %vm2011 = vweird.f32 %v2004
      %vm2012 = vmor %vm2010, %vm2011
      %v2013 = vsel %vm2012, %v2004, %v2009
      %v2014 = vrsqrt.pop %v1383
      %v2015 = vmul.f32 %v2014, %v1383
      %v2016 = vmul.f32 %v2015, %v2014
      %v2017 = vmul.f32 0.5, %v2016
      %v2018 = vsub.f32 1.5, %v2017
      %v2019 = vmul.f32 %v2014, %v2018
      %vm2020 = vweird.f32 %v1383
      %vm2021 = vweird.f32 %v2014
      %vm2022 = vmor %vm2020, %vm2021
      %v2023 = vsel %vm2022, %v2014, %v2019
      %v2024 = vmul.f32 %v1128, %v1393
      %v2025 = vmul.f32 %v1129, %v1403
      %v2026 = vmul.f32 %v1130, %v1413
      %v2027 = vmul.f32 %v1131, %v1423
      %v2028 = vmul.f32 %v1132, %v1433
      %v2029 = vmul.f32 %v1133, %v1443
      %v2030 = vmul.f32 %v1134, %v1453
      %v2031 = vmul.f32 %v1135, %v1463
      %v2032 = vmul.f32 %v1136, %v1473
      %v2033 = vmul.f32 %v1137, %v1483
      %v2034 = vmul.f32 %v1138, %v1493
      %v2035 = vmul.f32 %v1139, %v1503
      %v2036 = vmul.f32 %v1140, %v1513
      %v2037 = vmul.f32 %v1141, %v1523
      %v2038 = vmul.f32 %v1142, %v1533
      %v2039 = vmul.f32 %v1143, %v1543
      %v2040 = vmul.f32 %v1144, %v1553
      %v2041 = vmul.f32 %v1145, %v1563
      %v2042 = vmul.f32 %v1146, %v1573
      %v2043 = vmul.f32 %v1147, %v1583
      %v2044 = vmul.f32 %v1148, %v1593
      %v2045 = vmul.f32 %v1149, %v1603
      %v2046 = vmul.f32 %v1150, %v1613
      %v2047 = vmul.f32 %v1151, %v1623
      %v2048 = vmul.f32 %v1152, %v1633
      %v2049 = vmul.f32 %v1153, %v1643
      %v2050 = vmul.f32 %v1154, %v1653
      %v2051 = vmul.f32 %v1155, %v1663
      %v2052 = vmul.f32 %v1156, %v1673
      %v2053 = vmul.f32 %v1157, %v1683
      %v2054 = vmul.f32 %v1158, %v1693
      %v2055 = vmul.f32 %v1159, %v1703
      %v2056 = vmul.f32 %v1160, %v1713
      %v2057 = vmul.f32 %v1161, %v1723
      %v2058 = vmul.f32 %v1162, %v1733
      %v2059 = vmul.f32 %v1163, %v1743
      %v2060 = vmul.f32 %v1164, %v1753
      %v2061 = vmul.f32 %v1165, %v1763
      %v2062 = vmul.f32 %v1166, %v1773
      %v2063 = vmul.f32 %v1167, %v1783
      %v2064 = vmul.f32 %v1168, %v1793
      %v2065 = vmul.f32 %v1169, %v1803
      %v2066 = vmul.f32 %v1170, %v1813
      %v2067 = vmul.f32 %v1171, %v1823
      %v2068 = vmul.f32 %v1172, %v1833
      %v2069 = vmul.f32 %v1173, %v1843
      %v2070 = vmul.f32 %v1174, %v1853
      %v2071 = vmul.f32 %v1175, %v1863
      %v2072 = vmul.f32 %v1176, %v1873
      %v2073 = vmul.f32 %v1177, %v1883
      %v2074 = vmul.f32 %v1178, %v1893
      %v2075 = vmul.f32 %v1179, %v1903
      %v2076 = vmul.f32 %v1180, %v1913
      %v2077 = vmul.f32 %v1181, %v1923
      %v2078 = vmul.f32 %v1182, %v1933
      %v2079 = vmul.f32 %v1183, %v1943
      %v2080 = vmul.f32 %v1184, %v1953
      %v2081 = vmul.f32 %v1185, %v1963
      %v2082 = vmul.f32 %v1186, %v1973
      %v2083 = vmul.f32 %v1187, %v1983
      %v2084 = vmul.f32 %v1188, %v1993
      %v2085 = vmul.f32 %v1189, %v2003
      %v2086 = vmul.f32 %v1190, %v2013
      %v2087 = vmul.f32 %v1191, %v2023
      %v2088 = vperm.slane %v201, 1
      %v2089 = vmul.f32 %v2024, %v2088
      %v2090 = vmul.f32 %v2025, %v2088
      %v2091 = vmul.f32 %v2026, %v2088
      %v2092 = vmul.f32 %v2027, %v2088
      %v2093 = vmul.f32 %v2028, %v2088
      %v2094 = vmul.f32 %v2029, %v2088
      %v2095 = vmul.f32 %v2030, %v2088
      %v2096 = vmul.f32 %v2031, %v2088
      %v2097 = vmul.f32 %v2032, %v2088
      %v2098 = vmul.f32 %v2033, %v2088
      %v2099 = vmul.f32 %v2034, %v2088
      %v2100 = vmul.f32 %v2035, %v2088
      %v2101 = vmul.f32 %v2036, %v2088
      %v2102 = vmul.f32 %v2037, %v2088
      %v2103 = vmul.f32 %v2038, %v2088
      %v2104 = vmul.f32 %v2039, %v2088
      %v2105 = vmul.f32 %v2040, %v2088
      %v2106 = vmul.f32 %v2041, %v2088
      %v2107 = vmul.f32 %v2042, %v2088
      %v2108 = vmul.f32 %v2043, %v2088
      %v2109 = vmul.f32 %v2044, %v2088
      %v2110 = vmul.f32 %v2045, %v2088
      %v2111 = vmul.f32 %v2046, %v2088
      %v2112 = vmul.f32 %v2047, %v2088
      %v2113 = vmul.f32 %v2048, %v2088
      %v2114 = vmul.f32 %v2049, %v2088
      %v2115 = vmul.f32 %v2050, %v2088
      %v2116 = vmul.f32 %v2051, %v2088
      %v2117 = vmul.f32 %v2052, %v2088
      %v2118 = vmul.f32 %v2053, %v2088
      %v2119 = vmul.f32 %v2054, %v2088
      %v2120 = vmul.f32 %v2055, %v2088
      %v2121 = vmul.f32 %v2056, %v2088
      %v2122 = vmul.f32 %v2057, %v2088
      %v2123 = vmul.f32 %v2058, %v2088
      %v2124 = vmul.f32 %v2059, %v2088
      %v2125 = vmul.f32 %v2060, %v2088
      %v2126 = vmul.f32 %v2061, %v2088
      %v2127 = vmul.f32 %v2062, %v2088
      %v2128 = vmul.f32 %v2063, %v2088
      %v2129 = vmul.f32 %v2064, %v2088
      %v2130 = vmul.f32 %v2065, %v2088
      %v2131 = vmul.f32 %v2066, %v2088
      %v2132 = vmul.f32 %v2067, %v2088
      %v2133 = vmul.f32 %v2068, %v2088
      %v2134 = vmul.f32 %v2069, %v2088
      %v2135 = vmul.f32 %v2070, %v2088
      %v2136 = vmul.f32 %v2071, %v2088
      %v2137 = vmul.f32 %v2072, %v2088
      %v2138 = vmul.f32 %v2073, %v2088
      %v2139 = vmul.f32 %v2074, %v2088
      %v2140 = vmul.f32 %v2075, %v2088
      %v2141 = vmul.f32 %v2076, %v2088
      %v2142 = vmul.f32 %v2077, %v2088
      %v2143 = vmul.f32 %v2078, %v2088
      %v2144 = vmul.f32 %v2079, %v2088
      %v2145 = vmul.f32 %v2080, %v2088
      %v2146 = vmul.f32 %v2081, %v2088
      %v2147 = vmul.f32 %v2082, %v2088
      %v2148 = vmul.f32 %v2083, %v2088
      %v2149 = vmul.f32 %v2084, %v2088
      %v2150 = vmul.f32 %v2085, %v2088
      %v2151 = vmul.f32 %v2086, %v2088
      %v2152 = vmul.f32 %v2087, %v2088
      %v2153 = vperm.slane %v201, 2
      %v2154 = vadd.f32 %v2089, %v2153
      %v2155 = vadd.f32 %v2090, %v2153
      %v2156 = vadd.f32 %v2091, %v2153
      %v2157 = vadd.f32 %v2092, %v2153
      %v2158 = vadd.f32 %v2093, %v2153
      %v2159 = vadd.f32 %v2094, %v2153
      %v2160 = vadd.f32 %v2095, %v2153
      %v2161 = vadd.f32 %v2096, %v2153
      %v2162 = vadd.f32 %v2097, %v2153
      %v2163 = vadd.f32 %v2098, %v2153
      %v2164 = vadd.f32 %v2099, %v2153
      %v2165 = vadd.f32 %v2100, %v2153
      %v2166 = vadd.f32 %v2101, %v2153
      %v2167 = vadd.f32 %v2102, %v2153
      %v2168 = vadd.f32 %v2103, %v2153
      %v2169 = vadd.f32 %v2104, %v2153
      %v2170 = vadd.f32 %v2105, %v2153
      %v2171 = vadd.f32 %v2106, %v2153
      %v2172 = vadd.f32 %v2107, %v2153
      %v2173 = vadd.f32 %v2108, %v2153
      %v2174 = vadd.f32 %v2109, %v2153
      %v2175 = vadd.f32 %v2110, %v2153
      %v2176 = vadd.f32 %v2111, %v2153
      %v2177 = vadd.f32 %v2112, %v2153
      %v2178 = vadd.f32 %v2113, %v2153
      %v2179 = vadd.f32 %v2114, %v2153
      %v2180 = vadd.f32 %v2115, %v2153
      %v2181 = vadd.f32 %v2116, %v2153
      %v2182 = vadd.f32 %v2117, %v2153
      %v2183 = vadd.f32 %v2118, %v2153
      %v2184 = vadd.f32 %v2119, %v2153
      %v2185 = vadd.f32 %v2120, %v2153
      %v2186 = vadd.f32 %v2121, %v2153
      %v2187 = vadd.f32 %v2122, %v2153
      %v2188 = vadd.f32 %v2123, %v2153
      %v2189 = vadd.f32 %v2124, %v2153
      %v2190 = vadd.f32 %v2125, %v2153
      %v2191 = vadd.f32 %v2126, %v2153
      %v2192 = vadd.f32 %v2127, %v2153
      %v2193 = vadd.f32 %v2128, %v2153
      %v2194 = vadd.f32 %v2129, %v2153
      %v2195 = vadd.f32 %v2130, %v2153
      %v2196 = vadd.f32 %v2131, %v2153
      %v2197 = vadd.f32 %v2132, %v2153
      %v2198 = vadd.f32 %v2133, %v2153
      %v2199 = vadd.f32 %v2134, %v2153
      %v2200 = vadd.f32 %v2135, %v2153
      %v2201 = vadd.f32 %v2136, %v2153
      %v2202 = vadd.f32 %v2137, %v2153
      %v2203 = vadd.f32 %v2138, %v2153
      %v2204 = vadd.f32 %v2139, %v2153
      %v2205 = vadd.f32 %v2140, %v2153
      %v2206 = vadd.f32 %v2141, %v2153
      %v2207 = vadd.f32 %v2142, %v2153
      %v2208 = vadd.f32 %v2143, %v2153
      %v2209 = vadd.f32 %v2144, %v2153
      %v2210 = vadd.f32 %v2145, %v2153
      %v2211 = vadd.f32 %v2146, %v2153
      %v2212 = vadd.f32 %v2147, %v2153
      %v2213 = vadd.f32 %v2148, %v2153
      %v2214 = vadd.f32 %v2149, %v2153
      %v2215 = vadd.f32 %v2150, %v2153
      %v2216 = vadd.f32 %v2151, %v2153
      %v2217 = vadd.f32 %v2152, %v2153
      %v2218 = vmax.f32 %v2154, 0.0
      %v2219 = vmax.f32 %v2155, 0.0
      %v2220 = vmax.f32 %v2156, 0.0
      %v2221 = vmax.f32 %v2157, 0.0
      %v2222 = vmax.f32 %v2158, 0.0
      %v2223 = vmax.f32 %v2159, 0.0
      %v2224 = vmax.f32 %v2160, 0.0
      %v2225 = vmax.f32 %v2161, 0.0
      %v2226 = vmax.f32 %v2162, 0.0
      %v2227 = vmax.f32 %v2163, 0.0
      %v2228 = vmax.f32 %v2164, 0.0
      %v2229 = vmax.f32 %v2165, 0.0
      %v2230 = vmax.f32 %v2166, 0.0
      %v2231 = vmax.f32 %v2167, 0.0
      %v2232 = vmax.f32 %v2168, 0.0
      %v2233 = vmax.f32 %v2169, 0.0
      %v2234 = vmax.f32 %v2170, 0.0
      %v2235 = vmax.f32 %v2171, 0.0
      %v2236 = vmax.f32 %v2172, 0.0
      %v2237 = vmax.f32 %v2173, 0.0
      %v2238 = vmax.f32 %v2174, 0.0
      %v2239 = vmax.f32 %v2175, 0.0
      %v2240 = vmax.f32 %v2176, 0.0
      %v2241 = vmax.f32 %v2177, 0.0
      %v2242 = vmax.f32 %v2178, 0.0
      %v2243 = vmax.f32 %v2179, 0.0
      %v2244 = vmax.f32 %v2180, 0.0
      %v2245 = vmax.f32 %v2181, 0.0
      %v2246 = vmax.f32 %v2182, 0.0
      %v2247 = vmax.f32 %v2183, 0.0
      %v2248 = vmax.f32 %v2184, 0.0
      %v2249 = vmax.f32 %v2185, 0.0
      %v2250 = vmax.f32 %v2186, 0.0
      %v2251 = vmax.f32 %v2187, 0.0
      %v2252 = vmax.f32 %v2188, 0.0
      %v2253 = vmax.f32 %v2189, 0.0
      %v2254 = vmax.f32 %v2190, 0.0
      %v2255 = vmax.f32 %v2191, 0.0
      %v2256 = vmax.f32 %v2192, 0.0
      %v2257 = vmax.f32 %v2193, 0.0
      %v2258 = vmax.f32 %v2194, 0.0
      %v2259 = vmax.f32 %v2195, 0.0
      %v2260 = vmax.f32 %v2196, 0.0
      %v2261 = vmax.f32 %v2197, 0.0
      %v2262 = vmax.f32 %v2198, 0.0
      %v2263 = vmax.f32 %v2199, 0.0
      %v2264 = vmax.f32 %v2200, 0.0
      %v2265 = vmax.f32 %v2201, 0.0
      %v2266 = vmax.f32 %v2202, 0.0
      %v2267 = vmax.f32 %v2203, 0.0
      %v2268 = vmax.f32 %v2204, 0.0
      %v2269 = vmax.f32 %v2205, 0.0
      %v2270 = vmax.f32 %v2206, 0.0
      %v2271 = vmax.f32 %v2207, 0.0
      %v2272 = vmax.f32 %v2208, 0.0
      %v2273 = vmax.f32 %v2209, 0.0
      %v2274 = vmax.f32 %v2210, 0.0
      %v2275 = vmax.f32 %v2211, 0.0
      %v2276 = vmax.f32 %v2212, 0.0
      %v2277 = vmax.f32 %v2213, 0.0
      %v2278 = vmax.f32 %v2214, 0.0
      %v2279 = vmax.f32 %v2215, 0.0
      %v2280 = vmax.f32 %v2216, 0.0
      %v2281 = vmax.f32 %v2217, 0.0
      %v2282 = vld [vmem:[%s3] sm:$0xff]
      %v2283 = vld [vmem:[%s3 + $0x8] sm:$0xff]
      %v2284 = vld [vmem:[%s3 + $0x10] sm:$0xff]
      %v2285 = vld [vmem:[%s3 + $0x18] sm:$0xff]
      %v2286 = vld [vmem:[%s3 + $0x20] sm:$0xff]
      %v2287 = vld [vmem:[%s3 + $0x28] sm:$0xff]
      %v2288 = vld [vmem:[%s3 + $0x30] sm:$0xff]
      %v2289 = vld [vmem:[%s3 + $0x38] sm:$0xff]
      %v2290 = vld [vmem:[%s3 + $0x40] sm:$0xff]
      %v2291 = vld [vmem:[%s3 + $0x48] sm:$0xff]
      %v2292 = vld [vmem:[%s3 + $0x50] sm:$0xff]
      %v2293 = vld [vmem:[%s3 + $0x58] sm:$0xff]
      %v2294 = vld [vmem:[%s3 + $0x60] sm:$0xff]
      %v2295 = vld [vmem:[%s3 + $0x68] sm:$0xff]
      %v2296 = vld [vmem:[%s3 + $0x70] sm:$0xff]
      %v2297 = vld [vmem:[%s3 + $0x78] sm:$0xff]
      %v2298 = vperm.slane %v201, 3
      %2299 = vmatpush.msra.mxu0 %v2297
      %2300 = vmatpush.msra.mxu0 %v2296
      %2301 = vmatpush.msra.mxu0 %v2295
      %2302 = vmatpush.msra.mxu0 %v2294
      %2303 = vmatpush.msra.mxu0 %v2293
      %2304 = vmatpush.msra.mxu0 %v2292
      %2305 = vmatpush.msra.mxu0 %v2291
      %2306 = vmatpush.msra.mxu0 %v2290
      %2307 = vmatpush.msra.mxu0 %v2289
      %2308 = vmatpush.msra.mxu0 %v2288
      %2309 = vmatpush.msra.mxu0 %v2287
      %2310 = vmatpush.msra.mxu0 %v2286
      %2311 = vmatpush.msra.mxu0 %v2285
      %2312 = vmatpush.msra.mxu0 %v2284
      %2313 = vmatpush.msra.mxu0 %v2283
      %2314 = vmatpush.msra.mxu0 %v2282
      %2315 = vmatmul.f32.gmra.mxu0 %v2218
      %v2316 = vpop.f32.mrf.mxu0
      %v2317 = vadd.f32 %v2298, %v2316
      %2318 = vmatmul.f32.gmra.mxu0 %v2219
      %v2319 = vpop.f32.mrf.mxu0
      %v2320 = vadd.f32 %v2298, %v2319
      %2321 = vmatmul.f32.gmra.mxu0 %v2220
      %v2322 = vpop.f32.mrf.mxu0
      %v2323 = vadd.f32 %v2298, %v2322
      %2324 = vmatmul.f32.gmra.mxu0 %v2221
      %v2325 = vpop.f32.mrf.mxu0
      %v2326 = vadd.f32 %v2298, %v2325
      %2327 = vmatmul.f32.gmra.mxu0 %v2222
      %v2328 = vpop.f32.mrf.mxu0
      %v2329 = vadd.f32 %v2298, %v2328
      %2330 = vmatmul.f32.gmra.mxu0 %v2223
      %v2331 = vpop.f32.mrf.mxu0
      %v2332 = vadd.f32 %v2298, %v2331
      %2333 = vmatmul.f32.gmra.mxu0 %v2224
      %v2334 = vpop.f32.mrf.mxu0
      %v2335 = vadd.f32 %v2298, %v2334
      %2336 = vmatmul.f32.gmra.mxu0 %v2225
      %v2337 = vpop.f32.mrf.mxu0
      %v2338 = vadd.f32 %v2298, %v2337
      %2339 = vmatmul.f32.gmra.mxu0 %v2226
      %v2340 = vpop.f32.mrf.mxu0
      %v2341 = vadd.f32 %v2298, %v2340
      %2342 = vmatmul.f32.gmra.mxu0 %v2227
      %v2343 = vpop.f32.mrf.mxu0
      %v2344 = vadd.f32 %v2298, %v2343
      %2345 = vmatmul.f32.gmra.mxu0 %v2228
      %v2346 = vpop.f32.mrf.mxu0
      %v2347 = vadd.f32 %v2298, %v2346
      %2348 = vmatmul.f32.gmra.mxu0 %v2229
      %v2349 = vpop.f32.mrf.mxu0
      %v2350 = vadd.f32 %v2298, %v2349
      %2351 = vmatmul.f32.gmra.mxu0 %v2230
      %v2352 = vpop.f32.mrf.mxu0
      %v2353 = vadd.f32 %v2298, %v2352
      %2354 = vmatmul.f32.gmra.mxu0 %v2231
      %v2355 = vpop.f32.mrf.mxu0
      %v2356 = vadd.f32 %v2298, %v2355
      %2357 = vmatmul.f32.gmra.mxu0 %v2232
      %v2358 = vpop.f32.mrf.mxu0
      %v2359 = vadd.f32 %v2298, %v2358
      %2360 = vmatmul.f32.gmra.mxu0 %v2233
      %v2361 = vpop.f32.mrf.mxu0
      %v2362 = vadd.f32 %v2298, %v2361
      %2363 = vmatmul.f32.gmra.mxu0 %v2234
      %v2364 = vpop.f32.mrf.mxu0
      %v2365 = vadd.f32 %v2298, %v2364
      %2366 = vmatmul.f32.gmra.mxu0 %v2235
      %v2367 = vpop.f32.mrf.mxu0
      %v2368 = vadd.f32 %v2298, %v2367
      %2369 = vmatmul.f32.gmra.mxu0 %v2236
      %v2370 = vpop.f32.mrf.mxu0
      %v2371 = vadd.f32 %v2298, %v2370
      %2372 = vmatmul.f32.gmra.mxu0 %v2237
      %v2373 = vpop.f32.mrf.mxu0
      %v2374 = vadd.f32 %v2298, %v2373
      %2375 = vmatmul.f32.gmra.mxu0 %v2238
      %v2376 = vpop.f32.mrf.mxu0
      %v2377 = vadd.f32 %v2298, %v2376
      %2378 = vmatmul.f32.gmra.mxu0 %v2239
      %v2379 = vpop.f32.mrf.mxu0
      %v2380 = vadd.f32 %v2298, %v2379
      %2381 = vmatmul.f32.gmra.mxu0 %v2240
      %v2382 = vpop.f32.mrf.mxu0
      %v2383 = vadd.f32 %v2298, %v2382
      %2384 = vmatmul.f32.gmra.mxu0 %v2241
      %v2385 = vpop.f32.mrf.mxu0
      %v2386 = vadd.f32 %v2298, %v2385
      %2387 = vmatmul.f32.gmra.mxu0 %v2242
      %v2388 = vpop.f32.mrf.mxu0
      %v2389 = vadd.f32 %v2298, %v2388
      %2390 = vmatmul.f32.gmra.mxu0 %v2243
      %v2391 = vpop.f32.mrf.mxu0
      %v2392 = vadd.f32 %v2298, %v2391
      %2393 = vmatmul.f32.gmra.mxu0 %v2244
      %v2394 = vpop.f32.mrf.mxu0
      %v2395 = vadd.f32 %v2298, %v2394
      %2396 = vmatmul.f32.gmra.mxu0 %v2245
      %v2397 = vpop.f32.mrf.mxu0
      %v2398 = vadd.f32 %v2298, %v2397
      %2399 = vmatmul.f32.gmra.mxu0 %v2246
      %v2400 = vpop.f32.mrf.mxu0
      %v2401 = vadd.f32 %v2298, %v2400
      %2402 = vmatmul.f32.gmra.mxu0 %v2247
      %v2403 = vpop.f32.mrf.mxu0
      %v2404 = vadd.f32 %v2298, %v2403
      %2405 = vmatmul.f32.gmra.mxu0 %v2248
      %v2406 = vpop.f32.mrf.mxu0
      %v2407 = vadd.f32 %v2298, %v2406
      %2408 = vmatmul.f32.gmra.mxu0 %v2249
      %v2409 = vpop.f32.mrf.mxu0
      %v2410 = vadd.f32 %v2298, %v2409
      %2411 = vmatmul.f32.gmra.mxu0 %v2250
      %v2412 = vpop.f32.mrf.mxu0
      %v2413 = vadd.f32 %v2298, %v2412
      %2414 = vmatmul.f32.gmra.mxu0 %v2251
      %v2415 = vpop.f32.mrf.mxu0
      %v2416 = vadd.f32 %v2298, %v2415
      %2417 = vmatmul.f32.gmra.mxu0 %v2252
      %v2418 = vpop.f32.mrf.mxu0
      %v2419 = vadd.f32 %v2298, %v2418
      %2420 = vmatmul.f32.gmra.mxu0 %v2253
      %v2421 = vpop.f32.mrf.mxu0
      %v2422 = vadd.f32 %v2298, %v2421
      %2423 = vmatmul.f32.gmra.mxu0 %v2254
      %v2424 = vpop.f32.mrf.mxu0
      %v2425 = vadd.f32 %v2298, %v2424
      %2426 = vmatmul.f32.gmra.mxu0 %v2255
      %v2427 = vpop.f32.mrf.mxu0
      %v2428 = vadd.f32 %v2298, %v2427
      %2429 = vmatmul.f32.gmra.mxu0 %v2256
      %v2430 = vpop.f32.mrf.mxu0
      %v2431 = vadd.f32 %v2298, %v2430
      %2432 = vmatmul.f32.gmra.mxu0 %v2257
      %v2433 = vpop.f32.mrf.mxu0
      %v2434 = vadd.f32 %v2298, %v2433
      %2435 = vmatmul.f32.gmra.mxu0 %v2258
      %v2436 = vpop.f32.mrf.mxu0
      %v2437 = vadd.f32 %v2298, %v2436
      %2438 = vmatmul.f32.gmra.mxu0 %v2259
      %v2439 = vpop.f32.mrf.mxu0
      %v2440 = vadd.f32 %v2298, %v2439
      %2441 = vmatmul.f32.gmra.mxu0 %v2260
      %v2442 = vpop.f32.mrf.mxu0
      %v2443 = vadd.f32 %v2298, %v2442
      %2444 = vmatmul.f32.gmra.mxu0 %v2261
      %v2445 = vpop.f32.mrf.mxu0
      %v2446 = vadd.f32 %v2298, %v2445
      %2447 = vmatmul.f32.gmra.mxu0 %v2262
      %v2448 = vpop.f32.mrf.mxu0
      %v2449 = vadd.f32 %v2298, %v2448
      %2450 = vmatmul.f32.gmra.mxu0 %v2263
      %v2451 = vpop.f32.mrf.mxu0
      %v2452 = vadd.f32 %v2298, %v2451
      %2453 = vmatmul.f32.gmra.mxu0 %v2264
      %v2454 = vpop.f32.mrf.mxu0
      %v2455 = vadd.f32 %v2298, %v2454
      %2456 = vmatmul.f32.gmra.mxu0 %v2265
      %v2457 = vpop.f32.mrf.mxu0
      %v2458 = vadd.f32 %v2298, %v2457
      %2459 = vmatmul.f32.gmra.mxu0 %v2266
      %v2460 = vpop.f32.mrf.mxu0
      %v2461 = vadd.f32 %v2298, %v2460
      %2462 = vmatmul.f32.gmra.mxu0 %v2267
      %v2463 = vpop.f32.mrf.mxu0
      %v2464 = vadd.f32 %v2298, %v2463
      %2465 = vmatmul.f32.gmra.mxu0 %v2268
      %v2466 = vpop.f32.mrf.mxu0
      %v2467 = vadd.f32 %v2298, %v2466
      %2468 = vmatmul.f32.gmra.mxu0 %v2269
      %v2469 = vpop.f32.mrf.mxu0
      %v2470 = vadd.f32 %v2298, %v2469
      %2471 = vmatmul.f32.gmra.mxu0 %v2270
      %v2472 = vpop.f32.mrf.mxu0
      %v2473 = vadd.f32 %v2298, %v2472
      %2474 = vmatmul.f32.gmra.mxu0 %v2271
      %v2475 = vpop.f32.mrf.mxu0
      %v2476 = vadd.f32 %v2298, %v2475
      %2477 = vmatmul.f32.gmra.mxu0 %v2272
      %v2478 = vpop.f32.mrf.mxu0
      %v2479 = vadd.f32 %v2298, %v2478
      %2480 = vmatmul.f32.gmra.mxu0 %v2273
      %v2481 = vpop.f32.mrf.mxu0
      %v2482 = vadd.f32 %v2298, %v2481
      %2483 = vmatmul.f32.gmra.mxu0 %v2274
      %v2484 = vpop.f32.mrf.mxu0
      %v2485 = vadd.f32 %v2298, %v2484
      %2486 = vmatmul.f32.gmra.mxu0 %v2275
      %v2487 = vpop.f32.mrf.mxu0
      %v2488 = vadd.f32 %v2298, %v2487
      %2489 = vmatmul.f32.gmra.mxu0 %v2276
      %v2490 = vpop.f32.mrf.mxu0
      %v2491 = vadd.f32 %v2298, %v2490
      %2492 = vmatmul.f32.gmra.mxu0 %v2277
      %v2493 = vpop.f32.mrf.mxu0
      %v2494 = vadd.f32 %v2298, %v2493
      %2495 = vmatmul.f32.gmra.mxu0 %v2278
      %v2496 = vpop.f32.mrf.mxu0
      %v2497 = vadd.f32 %v2298, %v2496
      %2498 = vmatmul.f32.gmra.mxu0 %v2279
      %v2499 = vpop.f32.mrf.mxu0
      %v2500 = vadd.f32 %v2298, %v2499
      %2501 = vmatmul.f32.gmra.mxu0 %v2280
      %v2502 = vpop.f32.mrf.mxu0
      %v2503 = vadd.f32 %v2298, %v2502
      %2504 = vmatmul.f32.gmra.mxu0 %v2281
      %v2505 = vpop.f32.mrf.mxu0
      %v2506 = vadd.f32 %v2298, %v2505
      %2507 = vdwg.mxu0
      %v2508 = vmax.f32 %v2317, 0.0
      %v2509 = vmax.f32 %v2320, 0.0
      %v2510 = vmax.f32 %v2323, 0.0
      %v2511 = vmax.f32 %v2326, 0.0
      %v2512 = vmax.f32 %v2329, 0.0
      %v2513 = vmax.f32 %v2332, 0.0
      %v2514 = vmax.f32 %v2335, 0.0
      %v2515 = vmax.f32 %v2338, 0.0
      %v2516 = vmax.f32 %v2341, 0.0
      %v2517 = vmax.f32 %v2344, 0.0
      %v2518 = vmax.f32 %v2347, 0.0
      %v2519 = vmax.f32 %v2350, 0.0
      %v2520 = vmax.f32 %v2353, 0.0
      %v2521 = vmax.f32 %v2356, 0.0
      %v2522 = vmax.f32 %v2359, 0.0
      %v2523 = vmax.f32 %v2362, 0.0
      %v2524 = vmax.f32 %v2365, 0.0
      %v2525 = vmax.f32 %v2368, 0.0
      %v2526 = vmax.f32 %v2371, 0.0
      %v2527 = vmax.f32 %v2374, 0.0
      %v2528 = vmax.f32 %v2377, 0.0
      %v2529 = vmax.f32 %v2380, 0.0
      %v2530 = vmax.f32 %v2383, 0.0
      %v2531 = vmax.f32 %v2386, 0.0
      %v2532 = vmax.f32 %v2389, 0.0
      %v2533 = vmax.f32 %v2392, 0.0
      %v2534 = vmax.f32 %v2395, 0.0
      %v2535 = vmax.f32 %v2398, 0.0
      %v2536 = vmax.f32 %v2401, 0.0
      %v2537 = vmax.f32 %v2404, 0.0
      %v2538 = vmax.f32 %v2407, 0.0
      %v2539 = vmax.f32 %v2410, 0.0
      %v2540 = vmax.f32 %v2413, 0.0
      %v2541 = vmax.f32 %v2416, 0.0
      %v2542 = vmax.f32 %v2419, 0.0
      %v2543 = vmax.f32 %v2422, 0.0
      %v2544 = vmax.f32 %v2425, 0.0
      %v2545 = vmax.f32 %v2428, 0.0
      %v2546 = vmax.f32 %v2431, 0.0
      %v2547 = vmax.f32 %v2434, 0.0
      %v2548 = vmax.f32 %v2437, 0.0
      %v2549 = vmax.f32 %v2440, 0.0
      %v2550 = vmax.f32 %v2443, 0.0
      %v2551 = vmax.f32 %v2446, 0.0
      %v2552 = vmax.f32 %v2449, 0.0
      %v2553 = vmax.f32 %v2452, 0.0
      %v2554 = vmax.f32 %v2455, 0.0
      %v2555 = vmax.f32 %v2458, 0.0
      %v2556 = vmax.f32 %v2461, 0.0
      %v2557 = vmax.f32 %v2464, 0.0
      %v2558 = vmax.f32 %v2467, 0.0
      %v2559 = vmax.f32 %v2470, 0.0
      %v2560 = vmax.f32 %v2473, 0.0
      %v2561 = vmax.f32 %v2476, 0.0
      %v2562 = vmax.f32 %v2479, 0.0
      %v2563 = vmax.f32 %v2482, 0.0
      %v2564 = vmax.f32 %v2485, 0.0
      %v2565 = vmax.f32 %v2488, 0.0
      %v2566 = vmax.f32 %v2491, 0.0
      %v2567 = vmax.f32 %v2494, 0.0
      %v2568 = vmax.f32 %v2497, 0.0
      %v2569 = vmax.f32 %v2500, 0.0
      %v2570 = vmax.f32 %v2503, 0.0
      %v2571 = vmax.f32 %v2506, 0.0
      %2572 = vst [vmem:[%s199] sm:$0xff] %v2508
      %2573 = vst [vmem:[%s199 + $0x8] sm:$0xff] %v2509
      %2574 = vst [vmem:[%s199 + $0x10] sm:$0xff] %v2510
      %2575 = vst [vmem:[%s199 + $0x18] sm:$0xff] %v2511
      %2576 = vst [vmem:[%s199 + $0x20] sm:$0xff] %v2512
      %2577 = vst [vmem:[%s199 + $0x28] sm:$0xff] %v2513
      %2578 = vst [vmem:[%s199 + $0x30] sm:$0xff] %v2514
      %2579 = vst [vmem:[%s199 + $0x38] sm:$0xff] %v2515
      %2580 = vst [vmem:[%s199 + $0x40] sm:$0xff] %v2516
      %2581 = vst [vmem:[%s199 + $0x48] sm:$0xff] %v2517
      %2582 = vst [vmem:[%s199 + $0x50] sm:$0xff] %v2518
      %2583 = vst [vmem:[%s199 + $0x58] sm:$0xff] %v2519
      %2584 = vst [vmem:[%s199 + $0x60] sm:$0xff] %v2520
      %2585 = vst [vmem:[%s199 + $0x68] sm:$0xff] %v2521
      %2586 = vst [vmem:[%s199 + $0x70] sm:$0xff] %v2522
      %2587 = vst [vmem:[%s199 + $0x78] sm:$0xff] %v2523
      %2588 = vst [vmem:[%s199 + $0x80] sm:$0xff] %v2524
      %2589 = vst [vmem:[%s199 + $0x88] sm:$0xff] %v2525
      %2590 = vst [vmem:[%s199 + $0x90] sm:$0xff] %v2526
      %2591 = vst [vmem:[%s199 + $0x98] sm:$0xff] %v2527
      %2592 = vst [vmem:[%s199 + $0xa0] sm:$0xff] %v2528
      %2593 = vst [vmem:[%s199 + $0xa8] sm:$0xff] %v2529
      %2594 = vst [vmem:[%s199 + $0xb0] sm:$0xff] %v2530
      %2595 = vst [vmem:[%s199 + $0xb8] sm:$0xff] %v2531
      %2596 = vst [vmem:[%s199 + $0xc0] sm:$0xff] %v2532
      %2597 = vst [vmem:[%s199 + $0xc8] sm:$0xff] %v2533
      %2598 = vst [vmem:[%s199 + $0xd0] sm:$0xff] %v2534
      %2599 = vst [vmem:[%s199 + $0xd8] sm:$0xff] %v2535
      %2600 = vst [vmem:[%s199 + $0xe0] sm:$0xff] %v2536
      %2601 = vst [vmem:[%s199 + $0xe8] sm:$0xff] %v2537
      %2602 = vst [vmem:[%s199 + $0xf0] sm:$0xff] %v2538
      %2603 = vst [vmem:[%s199 + $0xf8] sm:$0xff] %v2539
      %2604 = vst [vmem:[%s199 + $0x100] sm:$0xff] %v2540
      %2605 = vst [vmem:[%s199 + $0x108] sm:$0xff] %v2541
      %2606 = vst [vmem:[%s199 + $0x110] sm:$0xff] %v2542
      %2607 = vst [vmem:[%s199 + $0x118] sm:$0xff] %v2543
      %2608 = vst [vmem:[%s199 + $0x120] sm:$0xff] %v2544
      %2609 = vst [vmem:[%s199 + $0x128] sm:$0xff] %v2545
      %2610 = vst [vmem:[%s199 + $0x130] sm:$0xff] %v2546
      %2611 = vst [vmem:[%s199 + $0x138] sm:$0xff] %v2547
      %2612 = vst [vmem:[%s199 + $0x140] sm:$0xff] %v2548
      %2613 = vst [vmem:[%s199 + $0x148] sm:$0xff] %v2549
      %2614 = vst [vmem:[%s199 + $0x150] sm:$0xff] %v2550
      %2615 = vst [vmem:[%s199 + $0x158] sm:$0xff] %v2551
      %2616 = vst [vmem:[%s199 + $0x160] sm:$0xff] %v2552
      %2617 = vst [vmem:[%s199 + $0x168] sm:$0xff] %v2553
      %2618 = vst [vmem:[%s199 + $0x170] sm:$0xff] %v2554
      %2619 = vst [vmem:[%s199 + $0x178] sm:$0xff] %v2555
      %2620 = vst [vmem:[%s199 + $0x180] sm:$0xff] %v2556
      %2621 = vst [vmem:[%s199 + $0x188] sm:$0xff] %v2557
      %2622 = vst [vmem:[%s199 + $0x190] sm:$0xff] %v2558
      %2623 = vst [vmem:[%s199 + $0x198] sm:$0xff] %v2559
      %2624 = vst [vmem:[%s199 + $0x1a0] sm:$0xff] %v2560
      %2625 = vst [vmem:[%s199 + $0x1a8] sm:$0xff] %v2561
      %2626 = vst [vmem:[%s199 + $0x1b0] sm:$0xff] %v2562
      %2627 = vst [vmem:[%s199 + $0x1b8] sm:$0xff] %v2563
      %2628 = vst [vmem:[%s199 + $0x1c0] sm:$0xff] %v2564
      %2629 = vst [vmem:[%s199 + $0x1c8] sm:$0xff] %v2565
      %2630 = vst [vmem:[%s199 + $0x1d0] sm:$0xff] %v2566
      %2631 = vst [vmem:[%s199 + $0x1d8] sm:$0xff] %v2567
      %2632 = vst [vmem:[%s199 + $0x1e0] sm:$0xff] %v2568
      %2633 = vst [vmem:[%s199 + $0x1e8] sm:$0xff] %v2569
      %2634 = vst [vmem:[%s199 + $0x1f0] sm:$0xff] %v2570
      %2635 = vst [vmem:[%s199 + $0x1f8] sm:$0xff] %v2571
      %s2636 = smul.u32 64, %s15
      %p2637 = scmp.lt.s32.totalorder %s2636, 127
      %s2638 = scalar_select %p2637, %s2636, 127
      %s2639 = smul.addr %s2638, 8
      %s2640 = scalar_lea.vmem %s4, %s2639
      // Predicated region
      $region37: #{mlp_forward.1} parent=35 // pred_check
        %p2641 = pneg %p122
      $region38: #{mlp_forward.1} parent=35 // pred_check_branch
        %2643 = sbr.rel (%p2641) target = $region40
      $region39: #{mlp_forward.1} parent=35 // pred_region
        %s2644 = smul.u32 64, %s15
      $region40: #{mlp_forward.1} parent=35 // pred_fallthru
        _
    $region36: #{mlp_forward.1} parent=5 // pred_fallthru
      _
    %p2645 = scmp.le.s32.totalorder 2, %s10
    // Predicated region
    $region41: #{mlp_forward.1} parent=5 // pred_check
      %p2646 = pneg %p2645
    $region42: #{mlp_forward.1} parent=5 // pred_check_branch
      %2648 = sbr.rel (%p2646) target = $region44
    $region43: #{mlp_forward.1} parent=5 // pred_region
      %s2649 = ssub.s32 %s10, 2
      // Predicated region
      $region45: #{mlp_forward.1} parent=43 // pred_check
        %p2650 = pneg %p128
      $region46: #{mlp_forward.1} parent=43 // pred_check_branch
        %2652 = sbr.rel (%p2650) target = $region48
      $region47: #{mlp_forward.1} parent=43 // pred_region
        %s2653 = smul.u32 64, %s16
        %p2654 = scmp.lt.s32.totalorder %s2653, 127
        %s2655 = scalar_select %p2654, %s2653, 127
        %s2656 = smul.addr %s2655, 8
        %s2657 = scalar_lea.vmem %s4, %s2656
      $region48: #{mlp_forward.1} parent=43 // pred_fallthru
        _
    $region44: #{mlp_forward.1} parent=5 // pred_fallthru
      _
  $region6: #{mlp_forward.1} parent=0 // loop_footer
    %s14 = sadd.s32 1, %s10
  $region7: #{mlp_forward.1} parent=0 // loop_footer_branch
    %9 = sbr.rel target = $region3
  $region8: #{mlp_forward.1} parent=0 // loop_exit
    _

</llo_original>
